<compile_context>
chip_gen: v6e
topology: v6e:2x2x1
jax: 0.10.0
libtpu: 0.0.40
codegen_flags: <defaults>
</compile_context>

<pallas_src>
import functools

import jax
import jax.numpy as jnp
from jax.experimental import pallas as pl
from jax.experimental.pallas import tpu as pltpu

LANES = 128
SUBLANES = 8
MIN_KERNEL_ELEMENTS = 1 << 16   # below this, pallas_call setup cost dominates


def _chip_config():
    """Per-generation block size (bytes per input per block), VMEM limit, TC count."""
    kind = ""
    try:
        kind = jax.devices()[0].device_kind.lower()
    except Exception:
        pass
    if "7" in kind:
        # v7x: 2 TensorCores/chip, 64 MiB VMEM per TC, ~3.2 TB/s HBM per TC.
        return {"block_bytes": 4 << 20, "vmem_limit": 48 << 20, "n_cores": 2}
    if "v6" in kind:
        # v6e: 1 TC, 128 MiB VMEM, ~1.4 TB/s HBM.
        return {"block_bytes": 4 << 20, "vmem_limit": 64 << 20, "n_cores": 1}
    if "v5" in kind and ("lite" in kind or "5e" in kind):
        # v5e: 1 TC, 16 MiB scoped-VMEM default (128 MiB physical), ~0.8 TB/s HBM.
        return {"block_bytes": 2 << 20, "vmem_limit": 32 << 20, "n_cores": 1}
    # Unknown / other chips: conservative single-core settings.
    return {"block_bytes": 2 << 20, "vmem_limit": 32 << 20, "n_cores": 1}


def _sse_kernel(o_ref, l_ref, part_ref, acc_ref, *,
                block_rows, rows_total, blocks_per_core, num_blocks, needs_mask):
    """Accumulate element-wise squared error into a single-vreg accumulator.

    o_ref, l_ref : VMEM (block_rows, 128) tiles, native input dtype
    part_ref     : VMEM (1, 8, 128) f32  -- per-core partial SSE (vreg-shaped)
    acc_ref      : VMEM (8, 128) f32 scratch accumulator (stays in vregs)
    """
    c = pl.program_id(0)   # TensorCore split ("parallel")
    i = pl.program_id(1)   # sequential blocks for this core ("arbitrary")

    @pl.when(i == 0)
    def _():
        acc_ref[...] = jnp.zeros_like(acc_ref)

    # Cast AFTER the VMEM load so bf16 inputs only move half the HBM bytes.
    d = o_ref[...].astype(jnp.float32) - l_ref[...].astype(jnp.float32)
    sq = d * d

    def fold(x):
        # (block_rows, 128) -> (8, 128): pure vreg-aligned VPU adds, no XLU.
        return x.reshape(block_rows // SUBLANES, SUBLANES, LANES).sum(axis=0)

    if needs_mask:
        # Logical (unclamped) block this step intends to cover.
        blk = c * blocks_per_core + i

        @pl.when(blk < num_blocks - 1)
        def _():
            # Full interior block: unmasked fast path.
            acc_ref[...] += fold(sq)

        @pl.when(blk >= num_blocks - 1)
        def _():
            # Tail block (Pallas boundary padding) and/or the duplicated
            # overflow block on the last core: rows past the real array
            # contribute 0.  Keep the select (NaN*0 would propagate).
            row_ids = blk * block_rows + jax.lax.broadcasted_iota(
                jnp.int32, (block_rows, LANES), 0)
            acc_ref[...] += fold(jnp.where(row_ids < rows_total, sq, 0.0))
    else:
        acc_ref[...] += fold(sq)

    @pl.when(i == pl.num_programs(1) - 1)
    def _():
        # No in-kernel cross-sublane reduce: just emit the (8,128) partial.
        part_ref[...] = acc_ref[...].reshape(1, SUBLANES, LANES)


def custom_loss(outputs, labels, alpha, lambda_alpha=1.0, block_rows=None,
                min_kernel_elements=MIN_KERNEL_ELEMENTS):
    """loss = mean((outputs - labels)**2) + lambda_alpha * |alpha|  (scalar f32)."""
    assert outputs.shape == labels.shape
    n = outputs.size  # true element count for the mean
    alpha_term = lambda_alpha * jnp.abs(jnp.asarray(alpha, jnp.float32))

    # Small-input fallback: fused XLA beats pallas_call/DMA setup cost.
    if n < min_kernel_elements:
        o32 = outputs.astype(jnp.float32)
        l32 = labels.astype(jnp.float32)
        return jnp.mean((o32 - l32) ** 2) + alpha_term

    o = outputs.reshape(-1)
    l = labels.reshape(-1)

    rows = n // LANES
    n_main = rows * LANES
    tail_sse = jnp.float32(0.0)
    if n_main != n:
        # Sum the <128-element ragged tail in plain XLA instead of padding (and
        # copying) the whole flattened arrays.
        # TODO(synk): the aligned-prefix slice below may still materialize one
        # copy; a fully copy-free path would need a 1-D ragged BlockSpec.
        ot = o[n_main:].astype(jnp.float32)
        lt = l[n_main:].astype(jnp.float32)
        tail_sse = jnp.sum((ot - lt) ** 2)
        o = o[:n_main]
        l = l[:n_main]

    o2 = o.reshape(rows, LANES)
    l2 = l.reshape(rows, LANES)

    cfg = _chip_config()
    itemsize = outputs.dtype.itemsize
    if block_rows is None:
        # Generation-sized blocks: amortize the ~0.35 us per-grid-step overhead.
        block_rows = cfg["block_bytes"] // (LANES * itemsize)
    # Keep block_rows a multiple of 32 (f32/bf16/int8 packed sublane tiling and
    # the (8,128) vreg fold) and never larger than the array.
    block_rows = min(block_rows, (rows // 32) * 32)
    block_rows = max(32, (block_rows // 32) * 32)

    num_blocks = pl.cdiv(rows, block_rows)
    # Split across TensorCores only on chips that actually have 2 TCs (v7x);
    # on single-TC chips the extra axis would just duplicate HBM reads.
    n_cores = cfg["n_cores"] if num_blocks >= 2 else 1
    blocks_per_core = pl.cdiv(num_blocks, n_cores)
    needs_mask = (rows % block_rows != 0) or (num_blocks % n_cores != 0)

    def in_index_map(c, i):
        blk = c * blocks_per_core + i
        if num_blocks % n_cores != 0:
            # Keep the DMA in-bounds for the overflow step of the last core;
            # its contribution is zeroed by the in-kernel row mask.
            blk = jnp.minimum(blk, num_blocks - 1)
        return (blk, 0)

    in_spec = pl.BlockSpec((block_rows, LANES), in_index_map)

    kernel = functools.partial(
        _sse_kernel,
        block_rows=block_rows,
        rows_total=rows,
        blocks_per_core=blocks_per_core,
        num_blocks=num_blocks,
        needs_mask=needs_mask,
    )

    partials = pl.pallas_call(
        kernel,
        out_shape=jax.ShapeDtypeStruct((n_cores, SUBLANES, LANES), jnp.float32),
        grid=(n_cores, blocks_per_core),
        in_specs=[in_spec, in_spec],
        out_specs=pl.BlockSpec((1, SUBLANES, LANES), lambda c, i: (c, 0, 0)),
        scratch_shapes=[pltpu.VMEM((SUBLANES, LANES), jnp.float32)],
        compiler_params=pltpu.CompilerParams(
            dimension_semantics=("parallel", "arbitrary"),
            vmem_limit_bytes=cfg["vmem_limit"]),
        cost_estimate=pl.CostEstimate(
            flops=3 * n_main,
            transcendentals=0,
            bytes_accessed=2 * n_main * itemsize
            + n_cores * SUBLANES * LANES * 4),
    )(o2, l2)

    mse = (jnp.sum(partials) + tail_sse) / n
    return mse + alpha_term


if __name__ == "__main__":
    key = jax.random.PRNGKey(0)
    k1, k2, k3, k4, k5 = jax.random.split(key, 5)

    # Small NCHW regression output, matching the PyTorch module's usage.
    # This size takes the fused-XLA fast path (by design).
    outputs = jax.random.normal(k1, (2, 4, 16, 16), dtype=jnp.float32)
    labels = jax.random.normal(k2, (2, 4, 16, 16), dtype=jnp.float32)
    alpha = jax.random.normal(k3, (), dtype=jnp.float32)  # scalar regularizer
    lambda_alpha = 1.0

    loss = jax.block_until_ready(custom_loss(outputs, labels, alpha, lambda_alpha))
    ref = jnp.mean((outputs - labels) ** 2) + lambda_alpha * jnp.abs(alpha)
    assert jnp.allclose(loss, ref, rtol=1e-5, atol=1e-5), (loss, ref)

    # Larger bf16 input: exercises the Pallas kernel with native-dtype loads,
    # in-kernel f32 cast and a single chip-sized block (unmasked path).
    out_b = jax.random.normal(k4, (4, 8, 96, 96), dtype=jnp.bfloat16)
    lab_b = jax.random.normal(k5, (4, 8, 96, 96), dtype=jnp.bfloat16)
    ref_b = (jnp.mean((out_b.astype(jnp.float32) - lab_b.astype(jnp.float32)) ** 2)
             + lambda_alpha * jnp.abs(alpha))

    loss_b = jax.block_until_ready(custom_loss(out_b, lab_b, alpha, lambda_alpha))
    assert jnp.allclose(loss_b, ref_b, rtol=1e-5, atol=1e-5), (loss_b, ref_b)

    # Same data, forced small blocks: exercises multi-block streaming, the
    # tail-block masking path and (on 2-TC chips) the dual-core split + clamp.
    loss_c = jax.block_until_ready(
        custom_loss(out_b, lab_b, alpha, lambda_alpha, block_rows=512))
    assert jnp.allclose(loss_c, ref_b, rtol=1e-5, atol=1e-5), (loss_c, ref_b)

    print("KERNEL_OK")
</pallas_src>

<mosaic_0001>
module attributes {stable_mosaic.version = 11 : i64} {
  func.func @_sse_kernel(%arg0: i32, %arg1: i32, %arg2: memref<2304x128xbf16, #tpu.memory_space<vmem>>, %arg3: memref<2304x128xbf16, #tpu.memory_space<vmem>>, %arg4: memref<1x8x128xf32, #tpu.memory_space<vmem>>, %arg5: memref<8x128xf32, #tpu.memory_space<vmem>>) attributes {dimension_semantics = [#tpu.dimension_semantics<parallel>, #tpu.dimension_semantics<arbitrary>], iteration_bounds = array<i64: 1, 1>, scalar_prefetch = 0 : i64, scratch_operands = 1 : i64, tpu.core_type = #tpu.core_type<tc>, window_params = [{transform_indices = @transform_0, window_bounds = array<i64: 2304, 128>}, {transform_indices = @transform_1, window_bounds = array<i64: 2304, 128>}, {transform_indices = @transform_2, window_bounds = array<i64: 1, 8, 128>}]} {
    %c0_i32 = arith.constant 0 : i32
    %0 = arith.cmpi eq, %arg1, %c0_i32 : i32
    %1 = arith.extui %0 : i1 to i32
    %c0_i32_0 = arith.constant 0 : i32
    %2 = arith.cmpi ne, %1, %c0_i32_0 : i32
    scf.if %2 {
      %cst_10 = arith.constant 0.000000e+00 : f32
      %17 = vector.broadcast %cst_10 : f32 to vector<8x128xf32>
      %c0_11 = arith.constant 0 : index
      %c0_12 = arith.constant 0 : index
      %18 = vector.load %arg5[%c0_11, %c0_12] : memref<8x128xf32, #tpu.memory_space<vmem>>, vector<8x128xf32>
      tpu.vector_store %arg5[%c0_11, %c0_12], %17 {strides = array<i32>} : memref<8x128xf32, #tpu.memory_space<vmem>>, vector<8x128xf32>,
    } else {
    }
    %c0 = arith.constant 0 : index
    %c0_1 = arith.constant 0 : index
    %3 = vector.load %arg2[%c0, %c0_1] : memref<2304x128xbf16, #tpu.memory_space<vmem>>, vector<2304x128xbf16>
    %4 = arith.extf %3 : vector<2304x128xbf16> to vector<2304x128xf32>
    %c0_2 = arith.constant 0 : index
    %c0_3 = arith.constant 0 : index
    %5 = vector.load %arg3[%c0_2, %c0_3] : memref<2304x128xbf16, #tpu.memory_space<vmem>>, vector<2304x128xbf16>
    %6 = arith.extf %5 : vector<2304x128xbf16> to vector<2304x128xf32>
    %7 = arith.subf %4, %6 : vector<2304x128xf32>
    %8 = arith.mulf %7, %7 : vector<2304x128xf32>
    %c0_4 = arith.constant 0 : index
    %c0_5 = arith.constant 0 : index
    %9 = vector.load %arg5[%c0_4, %c0_5] : memref<8x128xf32, #tpu.memory_space<vmem>>, vector<8x128xf32>
    %10 = vector.shape_cast %8 : vector<2304x128xf32> to vector<288x8x128xf32>
    %cst = arith.constant dense<0.000000e+00> : vector<8x128xf32>
    %11 = vector.multi_reduction <add>, %10, %cst [0] : vector<288x8x128xf32> to vector<8x128xf32>
    %12 = arith.addf %9, %11 : vector<8x128xf32>
    %c0_6 = arith.constant 0 : index
    %c0_7 = arith.constant 0 : index
    %13 = vector.load %arg5[%c0_6, %c0_7] : memref<8x128xf32, #tpu.memory_space<vmem>>, vector<8x128xf32>
    tpu.vector_store %arg5[%c0_6, %c0_7], %12 {strides = array<i32>} : memref<8x128xf32, #tpu.memory_space<vmem>>, vector<8x128xf32>,
    %c0_i32_8 = arith.constant 0 : i32
    %14 = arith.cmpi eq, %arg1, %c0_i32_8 : i32
    %15 = arith.extui %14 : i1 to i32
    %c0_i32_9 = arith.constant 0 : i32
    %16 = arith.cmpi ne, %15, %c0_i32_9 : i32
    scf.if %16 {
      %c0_10 = arith.constant 0 : index
      %c0_11 = arith.constant 0 : index
      %17 = vector.load %arg5[%c0_10, %c0_11] : memref<8x128xf32, #tpu.memory_space<vmem>>, vector<8x128xf32>
      %18 = vector.shape_cast %17 : vector<8x128xf32> to vector<1x8x128xf32>
      %c0_12 = arith.constant 0 : index
      %c0_13 = arith.constant 0 : index
      %c0_14 = arith.constant 0 : index
      %19 = vector.load %arg4[%c0_12, %c0_13, %c0_14] : memref<1x8x128xf32, #tpu.memory_space<vmem>>, vector<1x8x128xf32>
      tpu.vector_store %arg4[%c0_12, %c0_13, %c0_14], %18 {strides = array<i32>} : memref<1x8x128xf32, #tpu.memory_space<vmem>>, vector<1x8x128xf32>,
    } else {
    }
    return
  }
  func.func @transform_0(%arg0: i32, %arg1: i32) -> (i32, i32) {
    %c1_i32 = arith.constant 1 : i32
    %0 = arith.muli %arg0, %c1_i32 : i32
    %1 = arith.addi %0, %arg1 : i32
    %c0_i32 = arith.constant 0 : i32
    %c0_i32_0 = arith.constant 0 : i32
    return %1, %c0_i32 : i32, i32
  }
  func.func @transform_1(%arg0: i32, %arg1: i32) -> (i32, i32) {
    %c1_i32 = arith.constant 1 : i32
    %0 = arith.muli %arg0, %c1_i32 : i32
    %1 = arith.addi %0, %arg1 : i32
    %c0_i32 = arith.constant 0 : i32
    %c0_i32_0 = arith.constant 0 : i32
    return %1, %c0_i32 : i32, i32
  }
  func.func @transform_2(%arg0: i32, %arg1: i32) -> (i32, i32, i32) {
    %c0_i32 = arith.constant 0 : i32
    %c0_i32_0 = arith.constant 0 : i32
    %c0_i32_1 = arith.constant 0 : i32
    return %arg0, %c0_i32, %c0_i32_0 : i32, i32, i32
  }
}

</mosaic_0001>

<llo_original>
// kernel: tpu_custom_call.1
$region0: #{tpu_custom_call.1}
  #allocation0 [shape = 'u32[]', space=smem, size = 0x4, offset = 0x4, fixed_abs, tag = 'smem constant byte address 0x4 - core index']
  #allocation1 [shape = 'u32[144,128]{1,0:T(1,128)}', space=vmem, size = 0x12000, scoped, tag = 'internal scratch']
  #allocation2 [shape = 'f32[8,128]{1,0:T(8,128)}', space=vmem, size = 0x1000, scoped, tag = 'scratch operand']
  %s0 = inlined_call_operand.hbm [shape: bf16[2304,128], index: 0, kind: input, shape index: {}]
  %s1 = inlined_call_operand.hbm [shape: bf16[2304,128], index: 1, kind: input, shape index: {}]
  %s2 = inlined_call_operand.hbm [shape: f32[1,8,128], index: 2, kind: output, shape index: {}]
  %s3 = sld [smem:[#allocation0]]
  $region34: #{tpu_custom_call.1} parent=0
    _
  %s5 = ssub.s32 1, %s3
  %s6 = scalar_select 0, %s5, %s3
  $region1: #{tpu_custom_call.1} parent=0
    #allocation3 [shape = 'u8[589824]{0}', space=vmem, size = 0x90000, scoped, tag = 'input window, operand 0, single buffered']
    #allocation4 [shape = 's32[1]{0}', space=sflag, size = 0x4, scoped, tag = 'scoped memory for tpu_custom_call.1']
    #allocation5 [shape = 's32[1]{0}', space=sflag, size = 0x4, scoped, tag = 'scoped memory for tpu_custom_call.1']
    #allocation6 [shape = 'u8[589824]{0}', space=vmem, size = 0x90000, scoped, tag = 'input window, operand 1, single buffered']
    #allocation7 [shape = 's32[1]{0}', space=sflag, size = 0x4, scoped, tag = 'scoped memory for tpu_custom_call.1']
    #allocation8 [shape = 'u8[4096]{0}', space=vmem, size = 0x1000, scoped, tag = 'output window, operand 0, single buffered']
    %7 = vsyncpa [#allocation4], 0
    %8 = vsyncpa [#allocation7], 0
    %9 = vsyncpa [#allocation5], 0
    // Predicated region
    $region2: #{tpu_custom_call.1} parent=1 // pred_check
      _
    $region3: #{tpu_custom_call.1} parent=1 // pred_check_branch
      %11 = sbr.rel (0) target = $region5
    $region4: #{tpu_custom_call.1} parent=1 // pred_region
      %s12 = sadd.s32 0, 0
      %s13 = smul.u32 288, %s12
      %s15 = ssub.s32 18432, 18432
      %16 = vsyncadd [#allocation4], %s15
      %s17 = smul.addr %s13, 64
      %s18 = scalar_lea.hbm %s0, %s17
      %s19 = sshll.u32 [#allocation3], 4
      %s20 = int_to_ptr.vmem [resolvable:$true] %s19
      %25 = dma.hbm_to_vmem [thread:$0]  %s18, 18432, %s20, [#allocation4], 64, 64, 4
    $region5: #{tpu_custom_call.1} parent=1 // pred_fallthru
      _
    // Predicated region
    $region6: #{tpu_custom_call.1} parent=1 // pred_check
      _
    $region7: #{tpu_custom_call.1} parent=1 // pred_check_branch
      %27 = sbr.rel (0) target = $region9
    $region8: #{tpu_custom_call.1} parent=1 // pred_region
      %s28 = sadd.s32 0, 0
      %s29 = smul.u32 288, %s28
      %s31 = ssub.s32 18432, 18432
      %32 = vsyncadd [#allocation7], %s31
      %s33 = smul.addr %s29, 64
      %s34 = scalar_lea.hbm %s1, %s33
      %s35 = sshll.u32 [#allocation6], 4
      %s36 = int_to_ptr.vmem [resolvable:$true] %s35
      %41 = dma.hbm_to_vmem [thread:$0]  %s34, 18432, %s36, [#allocation7], 64, 64, 4
    $region9: #{tpu_custom_call.1} parent=1 // pred_fallthru
      _
    // Predicated region
    $region10: #{tpu_custom_call.1} parent=1 // pred_check
      _
    $region11: #{tpu_custom_call.1} parent=1 // pred_check_branch
      %43 = sbr.rel (0) target = $region13
    $region12: #{tpu_custom_call.1} parent=1 // pred_region
      %44 = dma.done [#allocation4], 18432
    $region13: #{tpu_custom_call.1} parent=1 // pred_fallthru
      _
    // Predicated region
    $region14: #{tpu_custom_call.1} parent=1 // pred_check
      _
    $region15: #{tpu_custom_call.1} parent=1 // pred_check_branch
      %46 = sbr.rel (0) target = $region17
    $region16: #{tpu_custom_call.1} parent=1 // pred_region
      %47 = dma.done [#allocation7], 18432
    $region17: #{tpu_custom_call.1} parent=1 // pred_fallthru
      _
    %s48 = sadd.s32 0, 0
    %s49 = smul.u32 288, %s48
    %s50 = sadd.s32 0, 0
    %s51 = smul.u32 288, %s50
    %p52 = scmp.eq.s32.totalorder 0, 0
    // Predicated region
    $region18: #{tpu_custom_call.1} parent=1 // pred_check
      %p53 = pneg %p52
    $region19: #{tpu_custom_call.1} parent=1 // pred_check_branch
      %55 = sbr.rel (%p53) target = $region21
    $region20: #{tpu_custom_call.1} parent=1 // pred_region
      %56 = vst [vmem:[#allocation2] sm:$0xff] 0.0
    $region21: #{tpu_custom_call.1} parent=1 // pred_fallthru
      _
    %v57 = vld [vmem:[#allocation3] sm:$0xf]
    %v58 = vld [vmem:[#allocation3 + $0x4] sm:$0xf]
    %v59 = vld [vmem:[#allocation3 + $0x8] sm:$0xf]
    %v60 = vld [vmem:[#allocation3 + $0xc] sm:$0xf]
    %v61 = vld [vmem:[#allocation3 + $0x10] sm:$0xf]
    %v62 = vld [vmem:[#allocation3 + $0x14] sm:$0xf]
    %v63 = vld [vmem:[#allocation3 + $0x18] sm:$0xf]
    %v64 = vld [vmem:[#allocation3 + $0x1c] sm:$0xf]
    %v65 = vld [vmem:[#allocation3 + $0x20] sm:$0xf]
    %v66 = vld [vmem:[#allocation3 + $0x24] sm:$0xf]
    %v67 = vld [vmem:[#allocation3 + $0x28] sm:$0xf]
    %v68 = vld [vmem:[#allocation3 + $0x2c] sm:$0xf]
    %v69 = vld [vmem:[#allocation3 + $0x30] sm:$0xf]
    %v70 = vld [vmem:[#allocation3 + $0x34] sm:$0xf]
    %v71 = vld [vmem:[#allocation3 + $0x38] sm:$0xf]
    %v72 = vld [vmem:[#allocation3 + $0x3c] sm:$0xf]
    %v73 = vld [vmem:[#allocation3 + $0x40] sm:$0xf]
    %v74 = vld [vmem:[#allocation3 + $0x44] sm:$0xf]
    %v75 = vld [vmem:[#allocation3 + $0x48] sm:$0xf]
    %v76 = vld [vmem:[#allocation3 + $0x4c] sm:$0xf]
    %v77 = vld [vmem:[#allocation3 + $0x50] sm:$0xf]
    %v78 = vld [vmem:[#allocation3 + $0x54] sm:$0xf]
    %v79 = vld [vmem:[#allocation3 + $0x58] sm:$0xf]
    %v80 = vld [vmem:[#allocation3 + $0x5c] sm:$0xf]
    %v81 = vld [vmem:[#allocation3 + $0x60] sm:$0xf]
    %v82 = vld [vmem:[#allocation3 + $0x64] sm:$0xf]
    %v83 = vld [vmem:[#allocation3 + $0x68] sm:$0xf]
    %v84 = vld [vmem:[#allocation3 + $0x6c] sm:$0xf]
    %v85 = vld [vmem:[#allocation3 + $0x70] sm:$0xf]
    %v86 = vld [vmem:[#allocation3 + $0x74] sm:$0xf]
    %v87 = vld [vmem:[#allocation3 + $0x78] sm:$0xf]
    %v88 = vld [vmem:[#allocation3 + $0x7c] sm:$0xf]
    %v89 = vld [vmem:[#allocation3 + $0x80] sm:$0xf]
    %v90 = vld [vmem:[#allocation3 + $0x84] sm:$0xf]
    %v91 = vld [vmem:[#allocation3 + $0x88] sm:$0xf]
    %v92 = vld [vmem:[#allocation3 + $0x8c] sm:$0xf]
    %v93 = vld [vmem:[#allocation3 + $0x90] sm:$0xf]
    %v94 = vld [vmem:[#allocation3 + $0x94] sm:$0xf]
    %v95 = vld [vmem:[#allocation3 + $0x98] sm:$0xf]
    %v96 = vld [vmem:[#allocation3 + $0x9c] sm:$0xf]
    %v97 = vld [vmem:[#allocation3 + $0xa0] sm:$0xf]
    %v98 = vld [vmem:[#allocation3 + $0xa4] sm:$0xf]
    %v99 = vld [vmem:[#allocation3 + $0xa8] sm:$0xf]
    %v100 = vld [vmem:[#allocation3 + $0xac] sm:$0xf]
    %v101 = vld [vmem:[#allocation3 + $0xb0] sm:$0xf]
    %v102 = vld [vmem:[#allocation3 + $0xb4] sm:$0xf]
    %v103 = vld [vmem:[#allocation3 + $0xb8] sm:$0xf]
    %v104 = vld [vmem:[#allocation3 + $0xbc] sm:$0xf]
    %v105 = vld [vmem:[#allocation3 + $0xc0] sm:$0xf]
    %v106 = vld [vmem:[#allocation3 + $0xc4] sm:$0xf]
    %v107 = vld [vmem:[#allocation3 + $0xc8] sm:$0xf]
    %v108 = vld [vmem:[#allocation3 + $0xcc] sm:$0xf]
    %v109 = vld [vmem:[#allocation3 + $0xd0] sm:$0xf]
    %v110 = vld [vmem:[#allocation3 + $0xd4] sm:$0xf]
    %v111 = vld [vmem:[#allocation3 + $0xd8] sm:$0xf]
    %v112 = vld [vmem:[#allocation3 + $0xdc] sm:$0xf]
    %v113 = vld [vmem:[#allocation3 + $0xe0] sm:$0xf]
    %v114 = vld [vmem:[#allocation3 + $0xe4] sm:$0xf]
    %v115 = vld [vmem:[#allocation3 + $0xe8] sm:$0xf]
    %v116 = vld [vmem:[#allocation3 + $0xec] sm:$0xf]
    %v117 = vld [vmem:[#allocation3 + $0xf0] sm:$0xf]
    %v118 = vld [vmem:[#allocation3 + $0xf4] sm:$0xf]
    %v119 = vld [vmem:[#allocation3 + $0xf8] sm:$0xf]
    %v120 = vld [vmem:[#allocation3 + $0xfc] sm:$0xf]
    %v121 = vld [vmem:[#allocation3 + $0x100] sm:$0xf]
    %v122 = vld [vmem:[#allocation3 + $0x104] sm:$0xf]
    %v123 = vld [vmem:[#allocation3 + $0x108] sm:$0xf]
    %v124 = vld [vmem:[#allocation3 + $0x10c] sm:$0xf]
    %v125 = vld [vmem:[#allocation3 + $0x110] sm:$0xf]
    %v126 = vld [vmem:[#allocation3 + $0x114] sm:$0xf]
    %v127 = vld [vmem:[#allocation3 + $0x118] sm:$0xf]
    %v128 = vld [vmem:[#allocation3 + $0x11c] sm:$0xf]
    %v129 = vld [vmem:[#allocation3 + $0x120] sm:$0xf]
    %v130 = vld [vmem:[#allocation3 + $0x124] sm:$0xf]
    %v131 = vld [vmem:[#allocation3 + $0x128] sm:$0xf]
    %v132 = vld [vmem:[#allocation3 + $0x12c] sm:$0xf]
    %v133 = vld [vmem:[#allocation3 + $0x130] sm:$0xf]
    %v134 = vld [vmem:[#allocation3 + $0x134] sm:$0xf]
    %v135 = vld [vmem:[#allocation3 + $0x138] sm:$0xf]
    %v136 = vld [vmem:[#allocation3 + $0x13c] sm:$0xf]
    %v137 = vld [vmem:[#allocation3 + $0x140] sm:$0xf]
    %v138 = vld [vmem:[#allocation3 + $0x144] sm:$0xf]
    %v139 = vld [vmem:[#allocation3 + $0x148] sm:$0xf]
    %v140 = vld [vmem:[#allocation3 + $0x14c] sm:$0xf]
    %v141 = vld [vmem:[#allocation3 + $0x150] sm:$0xf]
    %v142 = vld [vmem:[#allocation3 + $0x154] sm:$0xf]
    %v143 = vld [vmem:[#allocation3 + $0x158] sm:$0xf]
    %v144 = vld [vmem:[#allocation3 + $0x15c] sm:$0xf]
    %v145 = vld [vmem:[#allocation3 + $0x160] sm:$0xf]
    %v146 = vld [vmem:[#allocation3 + $0x164] sm:$0xf]
    %v147 = vld [vmem:[#allocation3 + $0x168] sm:$0xf]
    %v148 = vld [vmem:[#allocation3 + $0x16c] sm:$0xf]
    %v149 = vld [vmem:[#allocation3 + $0x170] sm:$0xf]
    %v150 = vld [vmem:[#allocation3 + $0x174] sm:$0xf]
    %v151 = vld [vmem:[#allocation3 + $0x178] sm:$0xf]
    %v152 = vld [vmem:[#allocation3 + $0x17c] sm:$0xf]
    %v153 = vld [vmem:[#allocation3 + $0x180] sm:$0xf]
    %v154 = vld [vmem:[#allocation3 + $0x184] sm:$0xf]
    %v155 = vld [vmem:[#allocation3 + $0x188] sm:$0xf]
    %v156 = vld [vmem:[#allocation3 + $0x18c] sm:$0xf]
    %v157 = vld [vmem:[#allocation3 + $0x190] sm:$0xf]
    %v158 = vld [vmem:[#allocation3 + $0x194] sm:$0xf]
    %v159 = vld [vmem:[#allocation3 + $0x198] sm:$0xf]
    %v160 = vld [vmem:[#allocation3 + $0x19c] sm:$0xf]
    %v161 = vld [vmem:[#allocation3 + $0x1a0] sm:$0xf]
    %v162 = vld [vmem:[#allocation3 + $0x1a4] sm:$0xf]
    %v163 = vld [vmem:[#allocation3 + $0x1a8] sm:$0xf]
    %v164 = vld [vmem:[#allocation3 + $0x1ac] sm:$0xf]
    %v165 = vld [vmem:[#allocation3 + $0x1b0] sm:$0xf]
    %v166 = vld [vmem:[#allocation3 + $0x1b4] sm:$0xf]
    %v167 = vld [vmem:[#allocation3 + $0x1b8] sm:$0xf]
    %v168 = vld [vmem:[#allocation3 + $0x1bc] sm:$0xf]
    %v169 = vld [vmem:[#allocation3 + $0x1c0] sm:$0xf]
    %v170 = vld [vmem:[#allocation3 + $0x1c4] sm:$0xf]
    %v171 = vld [vmem:[#allocation3 + $0x1c8] sm:$0xf]
    %v172 = vld [vmem:[#allocation3 + $0x1cc] sm:$0xf]
    %v173 = vld [vmem:[#allocation3 + $0x1d0] sm:$0xf]
    %v174 = vld [vmem:[#allocation3 + $0x1d4] sm:$0xf]
    %v175 = vld [vmem:[#allocation3 + $0x1d8] sm:$0xf]
    %v176 = vld [vmem:[#allocation3 + $0x1dc] sm:$0xf]
    %v177 = vld [vmem:[#allocation3 + $0x1e0] sm:$0xf]
    %v178 = vld [vmem:[#allocation3 + $0x1e4] sm:$0xf]
    %v179 = vld [vmem:[#allocation3 + $0x1e8] sm:$0xf]
    %v180 = vld [vmem:[#allocation3 + $0x1ec] sm:$0xf]
    %v181 = vld [vmem:[#allocation3 + $0x1f0] sm:$0xf]
    %v182 = vld [vmem:[#allocation3 + $0x1f4] sm:$0xf]
    %v183 = vld [vmem:[#allocation3 + $0x1f8] sm:$0xf]
    %v184 = vld [vmem:[#allocation3 + $0x1fc] sm:$0xf]
    %v185 = vld [vmem:[#allocation3 + $0x200] sm:$0xf]
    %v186 = vld [vmem:[#allocation3 + $0x204] sm:$0xf]
    %v187 = vld [vmem:[#allocation3 + $0x208] sm:$0xf]
    %v188 = vld [vmem:[#allocation3 + $0x20c] sm:$0xf]
    %v189 = vld [vmem:[#allocation3 + $0x210] sm:$0xf]
    %v190 = vld [vmem:[#allocation3 + $0x214] sm:$0xf]
    %v191 = vld [vmem:[#allocation3 + $0x218] sm:$0xf]
    %v192 = vld [vmem:[#allocation3 + $0x21c] sm:$0xf]
    %v193 = vld [vmem:[#allocation3 + $0x220] sm:$0xf]
    %v194 = vld [vmem:[#allocation3 + $0x224] sm:$0xf]
    %v195 = vld [vmem:[#allocation3 + $0x228] sm:$0xf]
    %v196 = vld [vmem:[#allocation3 + $0x22c] sm:$0xf]
    %v197 = vld [vmem:[#allocation3 + $0x230] sm:$0xf]
    %v198 = vld [vmem:[#allocation3 + $0x234] sm:$0xf]
    %v199 = vld [vmem:[#allocation3 + $0x238] sm:$0xf]
    %v200 = vld [vmem:[#allocation3 + $0x23c] sm:$0xf]
    %v201 = vld [vmem:[#allocation3 + $0x240] sm:$0xf]
    %v202 = vld [vmem:[#allocation3 + $0x244] sm:$0xf]
    %v203 = vld [vmem:[#allocation3 + $0x248] sm:$0xf]
    %v204 = vld [vmem:[#allocation3 + $0x24c] sm:$0xf]
    %v205 = vld [vmem:[#allocation3 + $0x250] sm:$0xf]
    %v206 = vld [vmem:[#allocation3 + $0x254] sm:$0xf]
    %v207 = vld [vmem:[#allocation3 + $0x258] sm:$0xf]
    %v208 = vld [vmem:[#allocation3 + $0x25c] sm:$0xf]
    %v209 = vld [vmem:[#allocation3 + $0x260] sm:$0xf]
    %v210 = vld [vmem:[#allocation3 + $0x264] sm:$0xf]
    %v211 = vld [vmem:[#allocation3 + $0x268] sm:$0xf]
    %v212 = vld [vmem:[#allocation3 + $0x26c] sm:$0xf]
    %v213 = vld [vmem:[#allocation3 + $0x270] sm:$0xf]
    %v214 = vld [vmem:[#allocation3 + $0x274] sm:$0xf]
    %v215 = vld [vmem:[#allocation3 + $0x278] sm:$0xf]
    %v216 = vld [vmem:[#allocation3 + $0x27c] sm:$0xf]
    %v217 = vld [vmem:[#allocation3 + $0x280] sm:$0xf]
    %v218 = vld [vmem:[#allocation3 + $0x284] sm:$0xf]
    %v219 = vld [vmem:[#allocation3 + $0x288] sm:$0xf]
    %v220 = vld [vmem:[#allocation3 + $0x28c] sm:$0xf]
    %v221 = vld [vmem:[#allocation3 + $0x290] sm:$0xf]
    %v222 = vld [vmem:[#allocation3 + $0x294] sm:$0xf]
    %v223 = vld [vmem:[#allocation3 + $0x298] sm:$0xf]
    %v224 = vld [vmem:[#allocation3 + $0x29c] sm:$0xf]
    %v225 = vld [vmem:[#allocation3 + $0x2a0] sm:$0xf]
    %v226 = vld [vmem:[#allocation3 + $0x2a4] sm:$0xf]
    %v227 = vld [vmem:[#allocation3 + $0x2a8] sm:$0xf]
    %v228 = vld [vmem:[#allocation3 + $0x2ac] sm:$0xf]
    %v229 = vld [vmem:[#allocation3 + $0x2b0] sm:$0xf]
    %v230 = vld [vmem:[#allocation3 + $0x2b4] sm:$0xf]
    %v231 = vld [vmem:[#allocation3 + $0x2b8] sm:$0xf]
    %v232 = vld [vmem:[#allocation3 + $0x2bc] sm:$0xf]
    %v233 = vld [vmem:[#allocation3 + $0x2c0] sm:$0xf]
    %v234 = vld [vmem:[#allocation3 + $0x2c4] sm:$0xf]
    %v235 = vld [vmem:[#allocation3 + $0x2c8] sm:$0xf]
    %v236 = vld [vmem:[#allocation3 + $0x2cc] sm:$0xf]
    %v237 = vld [vmem:[#allocation3 + $0x2d0] sm:$0xf]
    %v238 = vld [vmem:[#allocation3 + $0x2d4] sm:$0xf]
    %v239 = vld [vmem:[#allocation3 + $0x2d8] sm:$0xf]
    %v240 = vld [vmem:[#allocation3 + $0x2dc] sm:$0xf]
    %v241 = vld [vmem:[#allocation3 + $0x2e0] sm:$0xf]
    %v242 = vld [vmem:[#allocation3 + $0x2e4] sm:$0xf]
    %v243 = vld [vmem:[#allocation3 + $0x2e8] sm:$0xf]
    %v244 = vld [vmem:[#allocation3 + $0x2ec] sm:$0xf]
    %v245 = vld [vmem:[#allocation3 + $0x2f0] sm:$0xf]
    %v246 = vld [vmem:[#allocation3 + $0x2f4] sm:$0xf]
    %v247 = vld [vmem:[#allocation3 + $0x2f8] sm:$0xf]
    %v248 = vld [vmem:[#allocation3 + $0x2fc] sm:$0xf]
    %v249 = vld [vmem:[#allocation3 + $0x300] sm:$0xf]
    %v250 = vld [vmem:[#allocation3 + $0x304] sm:$0xf]
    %v251 = vld [vmem:[#allocation3 + $0x308] sm:$0xf]
    %v252 = vld [vmem:[#allocation3 + $0x30c] sm:$0xf]
    %v253 = vld [vmem:[#allocation3 + $0x310] sm:$0xf]
    %v254 = vld [vmem:[#allocation3 + $0x314] sm:$0xf]
    %v255 = vld [vmem:[#allocation3 + $0x318] sm:$0xf]
    %v256 = vld [vmem:[#allocation3 + $0x31c] sm:$0xf]
    %v257 = vld [vmem:[#allocation3 + $0x320] sm:$0xf]
    %v258 = vld [vmem:[#allocation3 + $0x324] sm:$0xf]
    %v259 = vld [vmem:[#allocation3 + $0x328] sm:$0xf]
    %v260 = vld [vmem:[#allocation3 + $0x32c] sm:$0xf]
    %v261 = vld [vmem:[#allocation3 + $0x330] sm:$0xf]
    %v262 = vld [vmem:[#allocation3 + $0x334] sm:$0xf]
    %v263 = vld [vmem:[#allocation3 + $0x338] sm:$0xf]
    %v264 = vld [vmem:[#allocation3 + $0x33c] sm:$0xf]
    %v265 = vld [vmem:[#allocation3 + $0x340] sm:$0xf]
    %v266 = vld [vmem:[#allocation3 + $0x344] sm:$0xf]
    %v267 = vld [vmem:[#allocation3 + $0x348] sm:$0xf]
    %v268 = vld [vmem:[#allocation3 + $0x34c] sm:$0xf]
    %v269 = vld [vmem:[#allocation3 + $0x350] sm:$0xf]
    %v270 = vld [vmem:[#allocation3 + $0x354] sm:$0xf]
    %v271 = vld [vmem:[#allocation3 + $0x358] sm:$0xf]
    %v272 = vld [vmem:[#allocation3 + $0x35c] sm:$0xf]
    %v273 = vld [vmem:[#allocation3 + $0x360] sm:$0xf]
    %v274 = vld [vmem:[#allocation3 + $0x364] sm:$0xf]
    %v275 = vld [vmem:[#allocation3 + $0x368] sm:$0xf]
    %v276 = vld [vmem:[#allocation3 + $0x36c] sm:$0xf]
    %v277 = vld [vmem:[#allocation3 + $0x370] sm:$0xf]
    %v278 = vld [vmem:[#allocation3 + $0x374] sm:$0xf]
    %v279 = vld [vmem:[#allocation3 + $0x378] sm:$0xf]
    %v280 = vld [vmem:[#allocation3 + $0x37c] sm:$0xf]
    %v281 = vld [vmem:[#allocation3 + $0x380] sm:$0xf]
    %v282 = vld [vmem:[#allocation3 + $0x384] sm:$0xf]
    %v283 = vld [vmem:[#allocation3 + $0x388] sm:$0xf]
    %v284 = vld [vmem:[#allocation3 + $0x38c] sm:$0xf]
    %v285 = vld [vmem:[#allocation3 + $0x390] sm:$0xf]
    %v286 = vld [vmem:[#allocation3 + $0x394] sm:$0xf]
    %v287 = vld [vmem:[#allocation3 + $0x398] sm:$0xf]
    %v288 = vld [vmem:[#allocation3 + $0x39c] sm:$0xf]
    %v289 = vld [vmem:[#allocation3 + $0x3a0] sm:$0xf]
    %v290 = vld [vmem:[#allocation3 + $0x3a4] sm:$0xf]
    %v291 = vld [vmem:[#allocation3 + $0x3a8] sm:$0xf]
    %v292 = vld [vmem:[#allocation3 + $0x3ac] sm:$0xf]
    %v293 = vld [vmem:[#allocation3 + $0x3b0] sm:$0xf]
    %v294 = vld [vmem:[#allocation3 + $0x3b4] sm:$0xf]
    %v295 = vld [vmem:[#allocation3 + $0x3b8] sm:$0xf]
    %v296 = vld [vmem:[#allocation3 + $0x3bc] sm:$0xf]
    %v297 = vld [vmem:[#allocation3 + $0x3c0] sm:$0xf]
    %v298 = vld [vmem:[#allocation3 + $0x3c4] sm:$0xf]
    %v299 = vld [vmem:[#allocation3 + $0x3c8] sm:$0xf]
    %v300 = vld [vmem:[#allocation3 + $0x3cc] sm:$0xf]
    %v301 = vld [vmem:[#allocation3 + $0x3d0] sm:$0xf]
    %v302 = vld [vmem:[#allocation3 + $0x3d4] sm:$0xf]
    %v303 = vld [vmem:[#allocation3 + $0x3d8] sm:$0xf]
    %v304 = vld [vmem:[#allocation3 + $0x3dc] sm:$0xf]
    %v305 = vld [vmem:[#allocation3 + $0x3e0] sm:$0xf]
    %v306 = vld [vmem:[#allocation3 + $0x3e4] sm:$0xf]
    %v307 = vld [vmem:[#allocation3 + $0x3e8] sm:$0xf]
    %v308 = vld [vmem:[#allocation3 + $0x3ec] sm:$0xf]
    %v309 = vld [vmem:[#allocation3 + $0x3f0] sm:$0xf]
    %v310 = vld [vmem:[#allocation3 + $0x3f4] sm:$0xf]
    %v311 = vld [vmem:[#allocation3 + $0x3f8] sm:$0xf]
    %v312 = vld [vmem:[#allocation3 + $0x3fc] sm:$0xf]
    %v313 = vld [vmem:[#allocation3 + $0x400] sm:$0xf]
    %v314 = vld [vmem:[#allocation3 + $0x404] sm:$0xf]
    %v315 = vld [vmem:[#allocation3 + $0x408] sm:$0xf]
    %v316 = vld [vmem:[#allocation3 + $0x40c] sm:$0xf]
    %v317 = vld [vmem:[#allocation3 + $0x410] sm:$0xf]
    %v318 = vld [vmem:[#allocation3 + $0x414] sm:$0xf]
    %v319 = vld [vmem:[#allocation3 + $0x418] sm:$0xf]
    %v320 = vld [vmem:[#allocation3 + $0x41c] sm:$0xf]
    %v321 = vld [vmem:[#allocation3 + $0x420] sm:$0xf]
    %v322 = vld [vmem:[#allocation3 + $0x424] sm:$0xf]
    %v323 = vld [vmem:[#allocation3 + $0x428] sm:$0xf]
    %v324 = vld [vmem:[#allocation3 + $0x42c] sm:$0xf]
    %v325 = vld [vmem:[#allocation3 + $0x430] sm:$0xf]
    %v326 = vld [vmem:[#allocation3 + $0x434] sm:$0xf]
    %v327 = vld [vmem:[#allocation3 + $0x438] sm:$0xf]
    %v328 = vld [vmem:[#allocation3 + $0x43c] sm:$0xf]
    %v329 = vld [vmem:[#allocation3 + $0x440] sm:$0xf]
    %v330 = vld [vmem:[#allocation3 + $0x444] sm:$0xf]
    %v331 = vld [vmem:[#allocation3 + $0x448] sm:$0xf]
    %v332 = vld [vmem:[#allocation3 + $0x44c] sm:$0xf]
    %v333 = vld [vmem:[#allocation3 + $0x450] sm:$0xf]
    %v334 = vld [vmem:[#allocation3 + $0x454] sm:$0xf]
    %v335 = vld [vmem:[#allocation3 + $0x458] sm:$0xf]
    %v336 = vld [vmem:[#allocation3 + $0x45c] sm:$0xf]
    %v337 = vld [vmem:[#allocation3 + $0x460] sm:$0xf]
    %v338 = vld [vmem:[#allocation3 + $0x464] sm:$0xf]
    %v339 = vld [vmem:[#allocation3 + $0x468] sm:$0xf]
    %v340 = vld [vmem:[#allocation3 + $0x46c] sm:$0xf]
    %v341 = vld [vmem:[#allocation3 + $0x470] sm:$0xf]
    %v342 = vld [vmem:[#allocation3 + $0x474] sm:$0xf]
    %v343 = vld [vmem:[#allocation3 + $0x478] sm:$0xf]
    %v344 = vld [vmem:[#allocation3 + $0x47c] sm:$0xf]
    %v345 = vunpack.c.l.bf16 %v57
    %v346 = vunpack.c.l.bf16 %v58
    %v347 = vunpack.c.l.bf16 %v59
    %v348 = vunpack.c.l.bf16 %v60
    %v349 = vunpack.c.l.bf16 %v61
    %v350 = vunpack.c.l.bf16 %v62
    %v351 = vunpack.c.l.bf16 %v63
    %v352 = vunpack.c.l.bf16 %v64
    %v353 = vunpack.c.l.bf16 %v65
    %v354 = vunpack.c.l.bf16 %v66
    %v355 = vunpack.c.l.bf16 %v67
    %v356 = vunpack.c.l.bf16 %v68
    %v357 = vunpack.c.l.bf16 %v69
    %v358 = vunpack.c.l.bf16 %v70
    %v359 = vunpack.c.l.bf16 %v71
    %v360 = vunpack.c.l.bf16 %v72
    %v361 = vunpack.c.l.bf16 %v73
    %v362 = vunpack.c.l.bf16 %v74
    %v363 = vunpack.c.l.bf16 %v75
    %v364 = vunpack.c.l.bf16 %v76
    %v365 = vunpack.c.l.bf16 %v77
    %v366 = vunpack.c.l.bf16 %v78
    %v367 = vunpack.c.l.bf16 %v79
    %v368 = vunpack.c.l.bf16 %v80
    %v369 = vunpack.c.l.bf16 %v81
    %v370 = vunpack.c.l.bf16 %v82
    %v371 = vunpack.c.l.bf16 %v83
    %v372 = vunpack.c.l.bf16 %v84
    %v373 = vunpack.c.l.bf16 %v85
    %v374 = vunpack.c.l.bf16 %v86
    %v375 = vunpack.c.l.bf16 %v87
    %v376 = vunpack.c.l.bf16 %v88
    %v377 = vunpack.c.l.bf16 %v89
    %v378 = vunpack.c.l.bf16 %v90
    %v379 = vunpack.c.l.bf16 %v91
    %v380 = vunpack.c.l.bf16 %v92
    %v381 = vunpack.c.l.bf16 %v93
    %v382 = vunpack.c.l.bf16 %v94
    %v383 = vunpack.c.l.bf16 %v95
    %v384 = vunpack.c.l.bf16 %v96
    %v385 = vunpack.c.l.bf16 %v97
    %v386 = vunpack.c.l.bf16 %v98
    %v387 = vunpack.c.l.bf16 %v99
    %v388 = vunpack.c.l.bf16 %v100
    %v389 = vunpack.c.l.bf16 %v101
    %v390 = vunpack.c.l.bf16 %v102
    %v391 = vunpack.c.l.bf16 %v103
    %v392 = vunpack.c.l.bf16 %v104
    %v393 = vunpack.c.l.bf16 %v105
    %v394 = vunpack.c.l.bf16 %v106
    %v395 = vunpack.c.l.bf16 %v107
    %v396 = vunpack.c.l.bf16 %v108
    %v397 = vunpack.c.l.bf16 %v109
    %v398 = vunpack.c.l.bf16 %v110
    %v399 = vunpack.c.l.bf16 %v111
    %v400 = vunpack.c.l.bf16 %v112
    %v401 = vunpack.c.l.bf16 %v113
    %v402 = vunpack.c.l.bf16 %v114
    %v403 = vunpack.c.l.bf16 %v115
    %v404 = vunpack.c.l.bf16 %v116
    %v405 = vunpack.c.l.bf16 %v117
    %v406 = vunpack.c.l.bf16 %v118
    %v407 = vunpack.c.l.bf16 %v119
    %v408 = vunpack.c.l.bf16 %v120
    %v409 = vunpack.c.l.bf16 %v121
    %v410 = vunpack.c.l.bf16 %v122
    %v411 = vunpack.c.l.bf16 %v123
    %v412 = vunpack.c.l.bf16 %v124
    %v413 = vunpack.c.l.bf16 %v125
    %v414 = vunpack.c.l.bf16 %v126
    %v415 = vunpack.c.l.bf16 %v127
    %v416 = vunpack.c.l.bf16 %v128
    %v417 = vunpack.c.l.bf16 %v129
    %v418 = vunpack.c.l.bf16 %v130
    %v419 = vunpack.c.l.bf16 %v131
    %v420 = vunpack.c.l.bf16 %v132
    %v421 = vunpack.c.l.bf16 %v133
    %v422 = vunpack.c.l.bf16 %v134
    %v423 = vunpack.c.l.bf16 %v135
    %v424 = vunpack.c.l.bf16 %v136
    %v425 = vunpack.c.l.bf16 %v137
    %v426 = vunpack.c.l.bf16 %v138
    %v427 = vunpack.c.l.bf16 %v139
    %v428 = vunpack.c.l.bf16 %v140
    %v429 = vunpack.c.l.bf16 %v141
    %v430 = vunpack.c.l.bf16 %v142
    %v431 = vunpack.c.l.bf16 %v143
    %v432 = vunpack.c.l.bf16 %v144
    %v433 = vunpack.c.l.bf16 %v145
    %v434 = vunpack.c.l.bf16 %v146
    %v435 = vunpack.c.l.bf16 %v147
    %v436 = vunpack.c.l.bf16 %v148
    %v437 = vunpack.c.l.bf16 %v149
    %v438 = vunpack.c.l.bf16 %v150
    %v439 = vunpack.c.l.bf16 %v151
    %v440 = vunpack.c.l.bf16 %v152
    %v441 = vunpack.c.l.bf16 %v153
    %v442 = vunpack.c.l.bf16 %v154
    %v443 = vunpack.c.l.bf16 %v155
    %v444 = vunpack.c.l.bf16 %v156
    %v445 = vunpack.c.l.bf16 %v157
    %v446 = vunpack.c.l.bf16 %v158
    %v447 = vunpack.c.l.bf16 %v159
    %v448 = vunpack.c.l.bf16 %v160
    %v449 = vunpack.c.l.bf16 %v161
    %v450 = vunpack.c.l.bf16 %v162
    %v451 = vunpack.c.l.bf16 %v163
    %v452 = vunpack.c.l.bf16 %v164
    %v453 = vunpack.c.l.bf16 %v165
    %v454 = vunpack.c.l.bf16 %v166
    %v455 = vunpack.c.l.bf16 %v167
    %v456 = vunpack.c.l.bf16 %v168
    %v457 = vunpack.c.l.bf16 %v169
    %v458 = vunpack.c.l.bf16 %v170
    %v459 = vunpack.c.l.bf16 %v171
    %v460 = vunpack.c.l.bf16 %v172
    %v461 = vunpack.c.l.bf16 %v173
    %v462 = vunpack.c.l.bf16 %v174
    %v463 = vunpack.c.l.bf16 %v175
    %v464 = vunpack.c.l.bf16 %v176
    %v465 = vunpack.c.l.bf16 %v177
    %v466 = vunpack.c.l.bf16 %v178
    %v467 = vunpack.c.l.bf16 %v179
    %v468 = vunpack.c.l.bf16 %v180
    %v469 = vunpack.c.l.bf16 %v181
    %v470 = vunpack.c.l.bf16 %v182
    %v471 = vunpack.c.l.bf16 %v183
    %v472 = vunpack.c.l.bf16 %v184
    %v473 = vunpack.c.l.bf16 %v185
    %v474 = vunpack.c.l.bf16 %v186
    %v475 = vunpack.c.l.bf16 %v187
    %v476 = vunpack.c.l.bf16 %v188
    %v477 = vunpack.c.l.bf16 %v189
    %v478 = vunpack.c.l.bf16 %v190
    %v479 = vunpack.c.l.bf16 %v191
    %v480 = vunpack.c.l.bf16 %v192
    %v481 = vunpack.c.l.bf16 %v193
    %v482 = vunpack.c.l.bf16 %v194
    %v483 = vunpack.c.l.bf16 %v195
    %v484 = vunpack.c.l.bf16 %v196
    %v485 = vunpack.c.l.bf16 %v197
    %v486 = vunpack.c.l.bf16 %v198
    %v487 = vunpack.c.l.bf16 %v199
    %v488 = vunpack.c.l.bf16 %v200
    %v489 = vunpack.c.l.bf16 %v201
    %v490 = vunpack.c.l.bf16 %v202
    %v491 = vunpack.c.l.bf16 %v203
    %v492 = vunpack.c.l.bf16 %v204
    %v493 = vunpack.c.l.bf16 %v205
    %v494 = vunpack.c.l.bf16 %v206
    %v495 = vunpack.c.l.bf16 %v207
    %v496 = vunpack.c.l.bf16 %v208
    %v497 = vunpack.c.l.bf16 %v209
    %v498 = vunpack.c.l.bf16 %v210
    %v499 = vunpack.c.l.bf16 %v211
    %v500 = vunpack.c.l.bf16 %v212
    %v501 = vunpack.c.l.bf16 %v213
    %v502 = vunpack.c.l.bf16 %v214
    %v503 = vunpack.c.l.bf16 %v215
    %v504 = vunpack.c.l.bf16 %v216
    %v505 = vunpack.c.l.bf16 %v217
    %v506 = vunpack.c.l.bf16 %v218
    %v507 = vunpack.c.l.bf16 %v219
    %v508 = vunpack.c.l.bf16 %v220
    %v509 = vunpack.c.l.bf16 %v221
    %v510 = vunpack.c.l.bf16 %v222
    %v511 = vunpack.c.l.bf16 %v223
    %v512 = vunpack.c.l.bf16 %v224
    %v513 = vunpack.c.l.bf16 %v225
    %v514 = vunpack.c.l.bf16 %v226
    %v515 = vunpack.c.l.bf16 %v227
    %v516 = vunpack.c.l.bf16 %v228
    %v517 = vunpack.c.l.bf16 %v229
    %v518 = vunpack.c.l.bf16 %v230
    %v519 = vunpack.c.l.bf16 %v231
    %v520 = vunpack.c.l.bf16 %v232
    %v521 = vunpack.c.l.bf16 %v233
    %v522 = vunpack.c.l.bf16 %v234
    %v523 = vunpack.c.l.bf16 %v235
    %v524 = vunpack.c.l.bf16 %v236
    %v525 = vunpack.c.l.bf16 %v237
    %v526 = vunpack.c.l.bf16 %v238
    %v527 = vunpack.c.l.bf16 %v239
    %v528 = vunpack.c.l.bf16 %v240
    %v529 = vunpack.c.l.bf16 %v241
    %v530 = vunpack.c.l.bf16 %v242
    %v531 = vunpack.c.l.bf16 %v243
    %v532 = vunpack.c.l.bf16 %v244
    %v533 = vunpack.c.l.bf16 %v245
    %v534 = vunpack.c.l.bf16 %v246
    %v535 = vunpack.c.l.bf16 %v247
    %v536 = vunpack.c.l.bf16 %v248
    %v537 = vunpack.c.l.bf16 %v249
    %v538 = vunpack.c.l.bf16 %v250
    %v539 = vunpack.c.l.bf16 %v251
    %v540 = vunpack.c.l.bf16 %v252
    %v541 = vunpack.c.l.bf16 %v253
    %v542 = vunpack.c.l.bf16 %v254
    %v543 = vunpack.c.l.bf16 %v255
    %v544 = vunpack.c.l.bf16 %v256
    %v545 = vunpack.c.l.bf16 %v257
    %v546 = vunpack.c.l.bf16 %v258
    %v547 = vunpack.c.l.bf16 %v259
    %v548 = vunpack.c.l.bf16 %v260
    %v549 = vunpack.c.l.bf16 %v261
    %v550 = vunpack.c.l.bf16 %v262
    %v551 = vunpack.c.l.bf16 %v263
    %v552 = vunpack.c.l.bf16 %v264
    %v553 = vunpack.c.l.bf16 %v265
    %v554 = vunpack.c.l.bf16 %v266
    %v555 = vunpack.c.l.bf16 %v267
    %v556 = vunpack.c.l.bf16 %v268
    %v557 = vunpack.c.l.bf16 %v269
    %v558 = vunpack.c.l.bf16 %v270
    %v559 = vunpack.c.l.bf16 %v271
    %v560 = vunpack.c.l.bf16 %v272
    %v561 = vunpack.c.l.bf16 %v273
    %v562 = vunpack.c.l.bf16 %v274
    %v563 = vunpack.c.l.bf16 %v275
    %v564 = vunpack.c.l.bf16 %v276
    %v565 = vunpack.c.l.bf16 %v277
    %v566 = vunpack.c.l.bf16 %v278
    %v567 = vunpack.c.l.bf16 %v279
    %v568 = vunpack.c.l.bf16 %v280
    %v569 = vunpack.c.l.bf16 %v281
    %v570 = vunpack.c.l.bf16 %v282
    %v571 = vunpack.c.l.bf16 %v283
    %v572 = vunpack.c.l.bf16 %v284
    %v573 = vunpack.c.l.bf16 %v285
    %v574 = vunpack.c.l.bf16 %v286
    %v575 = vunpack.c.l.bf16 %v287
    %v576 = vunpack.c.l.bf16 %v288
    %v577 = vunpack.c.l.bf16 %v289
    %v578 = vunpack.c.l.bf16 %v290
    %v579 = vunpack.c.l.bf16 %v291
    %v580 = vunpack.c.l.bf16 %v292
    %v581 = vunpack.c.l.bf16 %v293
    %v582 = vunpack.c.l.bf16 %v294
    %v583 = vunpack.c.l.bf16 %v295
    %v584 = vunpack.c.l.bf16 %v296
    %v585 = vunpack.c.l.bf16 %v297
    %v586 = vunpack.c.l.bf16 %v298
    %v587 = vunpack.c.l.bf16 %v299
    %v588 = vunpack.c.l.bf16 %v300
    %v589 = vunpack.c.l.bf16 %v301
    %v590 = vunpack.c.l.bf16 %v302
    %v591 = vunpack.c.l.bf16 %v303
    %v592 = vunpack.c.l.bf16 %v304
    %v593 = vunpack.c.l.bf16 %v305
    %v594 = vunpack.c.l.bf16 %v306
    %v595 = vunpack.c.l.bf16 %v307
    %v596 = vunpack.c.l.bf16 %v308
    %v597 = vunpack.c.l.bf16 %v309
    %v598 = vunpack.c.l.bf16 %v310
    %v599 = vunpack.c.l.bf16 %v311
    %v600 = vunpack.c.l.bf16 %v312
    %v601 = vunpack.c.l.bf16 %v313
    %v602 = vunpack.c.l.bf16 %v314
    %v603 = vunpack.c.l.bf16 %v315
    %v604 = vunpack.c.l.bf16 %v316
    %v605 = vunpack.c.l.bf16 %v317
    %v606 = vunpack.c.l.bf16 %v318
    %v607 = vunpack.c.l.bf16 %v319
    %v608 = vunpack.c.l.bf16 %v320
    %v609 = vunpack.c.l.bf16 %v321
    %v610 = vunpack.c.l.bf16 %v322
    %v611 = vunpack.c.l.bf16 %v323
    %v612 = vunpack.c.l.bf16 %v324
    %v613 = vunpack.c.l.bf16 %v325
    %v614 = vunpack.c.l.bf16 %v326
    %v615 = vunpack.c.l.bf16 %v327
    %v616 = vunpack.c.l.bf16 %v328
    %v617 = vunpack.c.l.bf16 %v329
    %v618 = vunpack.c.l.bf16 %v330
    %v619 = vunpack.c.l.bf16 %v331
    %v620 = vunpack.c.l.bf16 %v332
    %v621 = vunpack.c.l.bf16 %v333
    %v622 = vunpack.c.l.bf16 %v334
    %v623 = vunpack.c.l.bf16 %v335
    %v624 = vunpack.c.l.bf16 %v336
    %v625 = vunpack.c.l.bf16 %v337
    %v626 = vunpack.c.l.bf16 %v338
    %v627 = vunpack.c.l.bf16 %v339
    %v628 = vunpack.c.l.bf16 %v340
    %v629 = vunpack.c.l.bf16 %v341
    %v630 = vunpack.c.l.bf16 %v342
    %v631 = vunpack.c.l.bf16 %v343
    %v632 = vunpack.c.l.bf16 %v344
    %v633 = vld [vmem:[#allocation6] sm:$0xf]
    %v634 = vld [vmem:[#allocation6 + $0x4] sm:$0xf]
    %v635 = vld [vmem:[#allocation6 + $0x8] sm:$0xf]
    %v636 = vld [vmem:[#allocation6 + $0xc] sm:$0xf]
    %v637 = vld [vmem:[#allocation6 + $0x10] sm:$0xf]
    %v638 = vld [vmem:[#allocation6 + $0x14] sm:$0xf]
    %v639 = vld [vmem:[#allocation6 + $0x18] sm:$0xf]
    %v640 = vld [vmem:[#allocation6 + $0x1c] sm:$0xf]
    %v641 = vld [vmem:[#allocation6 + $0x20] sm:$0xf]
    %v642 = vld [vmem:[#allocation6 + $0x24] sm:$0xf]
    %v643 = vld [vmem:[#allocation6 + $0x28] sm:$0xf]
    %v644 = vld [vmem:[#allocation6 + $0x2c] sm:$0xf]
    %v645 = vld [vmem:[#allocation6 + $0x30] sm:$0xf]
    %v646 = vld [vmem:[#allocation6 + $0x34] sm:$0xf]
    %v647 = vld [vmem:[#allocation6 + $0x38] sm:$0xf]
    %v648 = vld [vmem:[#allocation6 + $0x3c] sm:$0xf]
    %v649 = vld [vmem:[#allocation6 + $0x40] sm:$0xf]
    %v650 = vld [vmem:[#allocation6 + $0x44] sm:$0xf]
    %v651 = vld [vmem:[#allocation6 + $0x48] sm:$0xf]
    %v652 = vld [vmem:[#allocation6 + $0x4c] sm:$0xf]
    %v653 = vld [vmem:[#allocation6 + $0x50] sm:$0xf]
    %v654 = vld [vmem:[#allocation6 + $0x54] sm:$0xf]
    %v655 = vld [vmem:[#allocation6 + $0x58] sm:$0xf]
    %v656 = vld [vmem:[#allocation6 + $0x5c] sm:$0xf]
    %v657 = vld [vmem:[#allocation6 + $0x60] sm:$0xf]
    %v658 = vld [vmem:[#allocation6 + $0x64] sm:$0xf]
    %v659 = vld [vmem:[#allocation6 + $0x68] sm:$0xf]
    %v660 = vld [vmem:[#allocation6 + $0x6c] sm:$0xf]
    %v661 = vld [vmem:[#allocation6 + $0x70] sm:$0xf]
    %v662 = vld [vmem:[#allocation6 + $0x74] sm:$0xf]
    %v663 = vld [vmem:[#allocation6 + $0x78] sm:$0xf]
    %v664 = vld [vmem:[#allocation6 + $0x7c] sm:$0xf]
    %v665 = vld [vmem:[#allocation6 + $0x80] sm:$0xf]
    %v666 = vld [vmem:[#allocation6 + $0x84] sm:$0xf]
    %v667 = vld [vmem:[#allocation6 + $0x88] sm:$0xf]
    %v668 = vld [vmem:[#allocation6 + $0x8c] sm:$0xf]
    %v669 = vld [vmem:[#allocation6 + $0x90] sm:$0xf]
    %v670 = vld [vmem:[#allocation6 + $0x94] sm:$0xf]
    %v671 = vld [vmem:[#allocation6 + $0x98] sm:$0xf]
    %v672 = vld [vmem:[#allocation6 + $0x9c] sm:$0xf]
    %v673 = vld [vmem:[#allocation6 + $0xa0] sm:$0xf]
    %v674 = vld [vmem:[#allocation6 + $0xa4] sm:$0xf]
    %v675 = vld [vmem:[#allocation6 + $0xa8] sm:$0xf]
    %v676 = vld [vmem:[#allocation6 + $0xac] sm:$0xf]
    %v677 = vld [vmem:[#allocation6 + $0xb0] sm:$0xf]
    %v678 = vld [vmem:[#allocation6 + $0xb4] sm:$0xf]
    %v679 = vld [vmem:[#allocation6 + $0xb8] sm:$0xf]
    %v680 = vld [vmem:[#allocation6 + $0xbc] sm:$0xf]
    %v681 = vld [vmem:[#allocation6 + $0xc0] sm:$0xf]
    %v682 = vld [vmem:[#allocation6 + $0xc4] sm:$0xf]
    %v683 = vld [vmem:[#allocation6 + $0xc8] sm:$0xf]
    %v684 = vld [vmem:[#allocation6 + $0xcc] sm:$0xf]
    %v685 = vld [vmem:[#allocation6 + $0xd0] sm:$0xf]
    %v686 = vld [vmem:[#allocation6 + $0xd4] sm:$0xf]
    %v687 = vld [vmem:[#allocation6 + $0xd8] sm:$0xf]
    %v688 = vld [vmem:[#allocation6 + $0xdc] sm:$0xf]
    %v689 = vld [vmem:[#allocation6 + $0xe0] sm:$0xf]
    %v690 = vld [vmem:[#allocation6 + $0xe4] sm:$0xf]
    %v691 = vld [vmem:[#allocation6 + $0xe8] sm:$0xf]
    %v692 = vld [vmem:[#allocation6 + $0xec] sm:$0xf]
    %v693 = vld [vmem:[#allocation6 + $0xf0] sm:$0xf]
    %v694 = vld [vmem:[#allocation6 + $0xf4] sm:$0xf]
    %v695 = vld [vmem:[#allocation6 + $0xf8] sm:$0xf]
    %v696 = vld [vmem:[#allocation6 + $0xfc] sm:$0xf]
    %v697 = vld [vmem:[#allocation6 + $0x100] sm:$0xf]
    %v698 = vld [vmem:[#allocation6 + $0x104] sm:$0xf]
    %v699 = vld [vmem:[#allocation6 + $0x108] sm:$0xf]
    %v700 = vld [vmem:[#allocation6 + $0x10c] sm:$0xf]
    %v701 = vld [vmem:[#allocation6 + $0x110] sm:$0xf]
    %v702 = vld [vmem:[#allocation6 + $0x114] sm:$0xf]
    %v703 = vld [vmem:[#allocation6 + $0x118] sm:$0xf]
    %v704 = vld [vmem:[#allocation6 + $0x11c] sm:$0xf]
    %v705 = vld [vmem:[#allocation6 + $0x120] sm:$0xf]
    %v706 = vld [vmem:[#allocation6 + $0x124] sm:$0xf]
    %v707 = vld [vmem:[#allocation6 + $0x128] sm:$0xf]
    %v708 = vld [vmem:[#allocation6 + $0x12c] sm:$0xf]
    %v709 = vld [vmem:[#allocation6 + $0x130] sm:$0xf]
    %v710 = vld [vmem:[#allocation6 + $0x134] sm:$0xf]
    %v711 = vld [vmem:[#allocation6 + $0x138] sm:$0xf]
    %v712 = vld [vmem:[#allocation6 + $0x13c] sm:$0xf]
    %v713 = vld [vmem:[#allocation6 + $0x140] sm:$0xf]
    %v714 = vld [vmem:[#allocation6 + $0x144] sm:$0xf]
    %v715 = vld [vmem:[#allocation6 + $0x148] sm:$0xf]
    %v716 = vld [vmem:[#allocation6 + $0x14c] sm:$0xf]
    %v717 = vld [vmem:[#allocation6 + $0x150] sm:$0xf]
    %v718 = vld [vmem:[#allocation6 + $0x154] sm:$0xf]
    %v719 = vld [vmem:[#allocation6 + $0x158] sm:$0xf]
    %v720 = vld [vmem:[#allocation6 + $0x15c] sm:$0xf]
    %v721 = vld [vmem:[#allocation6 + $0x160] sm:$0xf]
    %v722 = vld [vmem:[#allocation6 + $0x164] sm:$0xf]
    %v723 = vld [vmem:[#allocation6 + $0x168] sm:$0xf]
    %v724 = vld [vmem:[#allocation6 + $0x16c] sm:$0xf]
    %v725 = vld [vmem:[#allocation6 + $0x170] sm:$0xf]
    %v726 = vld [vmem:[#allocation6 + $0x174] sm:$0xf]
    %v727 = vld [vmem:[#allocation6 + $0x178] sm:$0xf]
    %v728 = vld [vmem:[#allocation6 + $0x17c] sm:$0xf]
    %v729 = vld [vmem:[#allocation6 + $0x180] sm:$0xf]
    %v730 = vld [vmem:[#allocation6 + $0x184] sm:$0xf]
    %v731 = vld [vmem:[#allocation6 + $0x188] sm:$0xf]
    %v732 = vld [vmem:[#allocation6 + $0x18c] sm:$0xf]
    %v733 = vld [vmem:[#allocation6 + $0x190] sm:$0xf]
    %v734 = vld [vmem:[#allocation6 + $0x194] sm:$0xf]
    %v735 = vld [vmem:[#allocation6 + $0x198] sm:$0xf]
    %v736 = vld [vmem:[#allocation6 + $0x19c] sm:$0xf]
    %v737 = vld [vmem:[#allocation6 + $0x1a0] sm:$0xf]
    %v738 = vld [vmem:[#allocation6 + $0x1a4] sm:$0xf]
    %v739 = vld [vmem:[#allocation6 + $0x1a8] sm:$0xf]
    %v740 = vld [vmem:[#allocation6 + $0x1ac] sm:$0xf]
    %v741 = vld [vmem:[#allocation6 + $0x1b0] sm:$0xf]
    %v742 = vld [vmem:[#allocation6 + $0x1b4] sm:$0xf]
    %v743 = vld [vmem:[#allocation6 + $0x1b8] sm:$0xf]
    %v744 = vld [vmem:[#allocation6 + $0x1bc] sm:$0xf]
    %v745 = vld [vmem:[#allocation6 + $0x1c0] sm:$0xf]
    %v746 = vld [vmem:[#allocation6 + $0x1c4] sm:$0xf]
    %v747 = vld [vmem:[#allocation6 + $0x1c8] sm:$0xf]
    %v748 = vld [vmem:[#allocation6 + $0x1cc] sm:$0xf]
    %v749 = vld [vmem:[#allocation6 + $0x1d0] sm:$0xf]
    %v750 = vld [vmem:[#allocation6 + $0x1d4] sm:$0xf]
    %v751 = vld [vmem:[#allocation6 + $0x1d8] sm:$0xf]
    %v752 = vld [vmem:[#allocation6 + $0x1dc] sm:$0xf]
    %v753 = vld [vmem:[#allocation6 + $0x1e0] sm:$0xf]
    %v754 = vld [vmem:[#allocation6 + $0x1e4] sm:$0xf]
    %v755 = vld [vmem:[#allocation6 + $0x1e8] sm:$0xf]
    %v756 = vld [vmem:[#allocation6 + $0x1ec] sm:$0xf]
    %v757 = vld [vmem:[#allocation6 + $0x1f0] sm:$0xf]
    %v758 = vld [vmem:[#allocation6 + $0x1f4] sm:$0xf]
    %v759 = vld [vmem:[#allocation6 + $0x1f8] sm:$0xf]
    %v760 = vld [vmem:[#allocation6 + $0x1fc] sm:$0xf]
    %v761 = vld [vmem:[#allocation6 + $0x200] sm:$0xf]
    %v762 = vld [vmem:[#allocation6 + $0x204] sm:$0xf]
    %v763 = vld [vmem:[#allocation6 + $0x208] sm:$0xf]
    %v764 = vld [vmem:[#allocation6 + $0x20c] sm:$0xf]
    %v765 = vld [vmem:[#allocation6 + $0x210] sm:$0xf]
    %v766 = vld [vmem:[#allocation6 + $0x214] sm:$0xf]
    %v767 = vld [vmem:[#allocation6 + $0x218] sm:$0xf]
    %v768 = vld [vmem:[#allocation6 + $0x21c] sm:$0xf]
    %v769 = vld [vmem:[#allocation6 + $0x220] sm:$0xf]
    %v770 = vld [vmem:[#allocation6 + $0x224] sm:$0xf]
    %v771 = vld [vmem:[#allocation6 + $0x228] sm:$0xf]
    %v772 = vld [vmem:[#allocation6 + $0x22c] sm:$0xf]
    %v773 = vld [vmem:[#allocation6 + $0x230] sm:$0xf]
    %v774 = vld [vmem:[#allocation6 + $0x234] sm:$0xf]
    %v775 = vld [vmem:[#allocation6 + $0x238] sm:$0xf]
    %v776 = vld [vmem:[#allocation6 + $0x23c] sm:$0xf]
    %v777 = vld [vmem:[#allocation6 + $0x240] sm:$0xf]
    %v778 = vld [vmem:[#allocation6 + $0x244] sm:$0xf]
    %v779 = vld [vmem:[#allocation6 + $0x248] sm:$0xf]
    %v780 = vld [vmem:[#allocation6 + $0x24c] sm:$0xf]
    %v781 = vld [vmem:[#allocation6 + $0x250] sm:$0xf]
    %v782 = vld [vmem:[#allocation6 + $0x254] sm:$0xf]
    %v783 = vld [vmem:[#allocation6 + $0x258] sm:$0xf]
    %v784 = vld [vmem:[#allocation6 + $0x25c] sm:$0xf]
    %v785 = vld [vmem:[#allocation6 + $0x260] sm:$0xf]
    %v786 = vld [vmem:[#allocation6 + $0x264] sm:$0xf]
    %v787 = vld [vmem:[#allocation6 + $0x268] sm:$0xf]
    %v788 = vld [vmem:[#allocation6 + $0x26c] sm:$0xf]
    %v789 = vld [vmem:[#allocation6 + $0x270] sm:$0xf]
    %v790 = vld [vmem:[#allocation6 + $0x274] sm:$0xf]
    %v791 = vld [vmem:[#allocation6 + $0x278] sm:$0xf]
    %v792 = vld [vmem:[#allocation6 + $0x27c] sm:$0xf]
    %v793 = vld [vmem:[#allocation6 + $0x280] sm:$0xf]
    %v794 = vld [vmem:[#allocation6 + $0x284] sm:$0xf]
    %v795 = vld [vmem:[#allocation6 + $0x288] sm:$0xf]
    %v796 = vld [vmem:[#allocation6 + $0x28c] sm:$0xf]
    %v797 = vld [vmem:[#allocation6 + $0x290] sm:$0xf]
    %v798 = vld [vmem:[#allocation6 + $0x294] sm:$0xf]
    %v799 = vld [vmem:[#allocation6 + $0x298] sm:$0xf]
    %v800 = vld [vmem:[#allocation6 + $0x29c] sm:$0xf]
    %v801 = vld [vmem:[#allocation6 + $0x2a0] sm:$0xf]
    %v802 = vld [vmem:[#allocation6 + $0x2a4] sm:$0xf]
    %v803 = vld [vmem:[#allocation6 + $0x2a8] sm:$0xf]
    %v804 = vld [vmem:[#allocation6 + $0x2ac] sm:$0xf]
    %v805 = vld [vmem:[#allocation6 + $0x2b0] sm:$0xf]
    %v806 = vld [vmem:[#allocation6 + $0x2b4] sm:$0xf]
    %v807 = vld [vmem:[#allocation6 + $0x2b8] sm:$0xf]
    %v808 = vld [vmem:[#allocation6 + $0x2bc] sm:$0xf]
    %v809 = vld [vmem:[#allocation6 + $0x2c0] sm:$0xf]
    %v810 = vld [vmem:[#allocation6 + $0x2c4] sm:$0xf]
    %v811 = vld [vmem:[#allocation6 + $0x2c8] sm:$0xf]
    %v812 = vld [vmem:[#allocation6 + $0x2cc] sm:$0xf]
    %v813 = vld [vmem:[#allocation6 + $0x2d0] sm:$0xf]
    %v814 = vld [vmem:[#allocation6 + $0x2d4] sm:$0xf]
    %v815 = vld [vmem:[#allocation6 + $0x2d8] sm:$0xf]
    %v816 = vld [vmem:[#allocation6 + $0x2dc] sm:$0xf]
    %v817 = vld [vmem:[#allocation6 + $0x2e0] sm:$0xf]
    %v818 = vld [vmem:[#allocation6 + $0x2e4] sm:$0xf]
    %v819 = vld [vmem:[#allocation6 + $0x2e8] sm:$0xf]
    %v820 = vld [vmem:[#allocation6 + $0x2ec] sm:$0xf]
    %v821 = vld [vmem:[#allocation6 + $0x2f0] sm:$0xf]
    %v822 = vld [vmem:[#allocation6 + $0x2f4] sm:$0xf]
    %v823 = vld [vmem:[#allocation6 + $0x2f8] sm:$0xf]
    %v824 = vld [vmem:[#allocation6 + $0x2fc] sm:$0xf]
    %v825 = vld [vmem:[#allocation6 + $0x300] sm:$0xf]
    %v826 = vld [vmem:[#allocation6 + $0x304] sm:$0xf]
    %v827 = vld [vmem:[#allocation6 + $0x308] sm:$0xf]
    %v828 = vld [vmem:[#allocation6 + $0x30c] sm:$0xf]
    %v829 = vld [vmem:[#allocation6 + $0x310] sm:$0xf]
    %v830 = vld [vmem:[#allocation6 + $0x314] sm:$0xf]
    %v831 = vld [vmem:[#allocation6 + $0x318] sm:$0xf]
    %v832 = vld [vmem:[#allocation6 + $0x31c] sm:$0xf]
    %v833 = vld [vmem:[#allocation6 + $0x320] sm:$0xf]
    %v834 = vld [vmem:[#allocation6 + $0x324] sm:$0xf]
    %v835 = vld [vmem:[#allocation6 + $0x328] sm:$0xf]
    %v836 = vld [vmem:[#allocation6 + $0x32c] sm:$0xf]
    %v837 = vld [vmem:[#allocation6 + $0x330] sm:$0xf]
    %v838 = vld [vmem:[#allocation6 + $0x334] sm:$0xf]
    %v839 = vld [vmem:[#allocation6 + $0x338] sm:$0xf]
    %v840 = vld [vmem:[#allocation6 + $0x33c] sm:$0xf]
    %v841 = vld [vmem:[#allocation6 + $0x340] sm:$0xf]
    %v842 = vld [vmem:[#allocation6 + $0x344] sm:$0xf]
    %v843 = vld [vmem:[#allocation6 + $0x348] sm:$0xf]
    %v844 = vld [vmem:[#allocation6 + $0x34c] sm:$0xf]
    %v845 = vld [vmem:[#allocation6 + $0x350] sm:$0xf]
    %v846 = vld [vmem:[#allocation6 + $0x354] sm:$0xf]
    %v847 = vld [vmem:[#allocation6 + $0x358] sm:$0xf]
    %v848 = vld [vmem:[#allocation6 + $0x35c] sm:$0xf]
    %v849 = vld [vmem:[#allocation6 + $0x360] sm:$0xf]
    %v850 = vld [vmem:[#allocation6 + $0x364] sm:$0xf]
    %v851 = vld [vmem:[#allocation6 + $0x368] sm:$0xf]
    %v852 = vld [vmem:[#allocation6 + $0x36c] sm:$0xf]
    %v853 = vld [vmem:[#allocation6 + $0x370] sm:$0xf]
    %v854 = vld [vmem:[#allocation6 + $0x374] sm:$0xf]
    %v855 = vld [vmem:[#allocation6 + $0x378] sm:$0xf]
    %v856 = vld [vmem:[#allocation6 + $0x37c] sm:$0xf]
    %v857 = vld [vmem:[#allocation6 + $0x380] sm:$0xf]
    %v858 = vld [vmem:[#allocation6 + $0x384] sm:$0xf]
    %v859 = vld [vmem:[#allocation6 + $0x388] sm:$0xf]
    %v860 = vld [vmem:[#allocation6 + $0x38c] sm:$0xf]
    %v861 = vld [vmem:[#allocation6 + $0x390] sm:$0xf]
    %v862 = vld [vmem:[#allocation6 + $0x394] sm:$0xf]
    %v863 = vld [vmem:[#allocation6 + $0x398] sm:$0xf]
    %v864 = vld [vmem:[#allocation6 + $0x39c] sm:$0xf]
    %v865 = vld [vmem:[#allocation6 + $0x3a0] sm:$0xf]
    %v866 = vld [vmem:[#allocation6 + $0x3a4] sm:$0xf]
    %v867 = vld [vmem:[#allocation6 + $0x3a8] sm:$0xf]
    %v868 = vld [vmem:[#allocation6 + $0x3ac] sm:$0xf]
    %v869 = vld [vmem:[#allocation6 + $0x3b0] sm:$0xf]
    %v870 = vld [vmem:[#allocation6 + $0x3b4] sm:$0xf]
    %v871 = vld [vmem:[#allocation6 + $0x3b8] sm:$0xf]
    %v872 = vld [vmem:[#allocation6 + $0x3bc] sm:$0xf]
    %v873 = vld [vmem:[#allocation6 + $0x3c0] sm:$0xf]
    %v874 = vld [vmem:[#allocation6 + $0x3c4] sm:$0xf]
    %v875 = vld [vmem:[#allocation6 + $0x3c8] sm:$0xf]
    %v876 = vld [vmem:[#allocation6 + $0x3cc] sm:$0xf]
    %v877 = vld [vmem:[#allocation6 + $0x3d0] sm:$0xf]
    %v878 = vld [vmem:[#allocation6 + $0x3d4] sm:$0xf]
    %v879 = vld [vmem:[#allocation6 + $0x3d8] sm:$0xf]
    %v880 = vld [vmem:[#allocation6 + $0x3dc] sm:$0xf]
    %v881 = vld [vmem:[#allocation6 + $0x3e0] sm:$0xf]
    %v882 = vld [vmem:[#allocation6 + $0x3e4] sm:$0xf]
    %v883 = vld [vmem:[#allocation6 + $0x3e8] sm:$0xf]
    %v884 = vld [vmem:[#allocation6 + $0x3ec] sm:$0xf]
    %v885 = vld [vmem:[#allocation6 + $0x3f0] sm:$0xf]
    %v886 = vld [vmem:[#allocation6 + $0x3f4] sm:$0xf]
    %v887 = vld [vmem:[#allocation6 + $0x3f8] sm:$0xf]
    %v888 = vld [vmem:[#allocation6 + $0x3fc] sm:$0xf]
    %v889 = vld [vmem:[#allocation6 + $0x400] sm:$0xf]
    %v890 = vld [vmem:[#allocation6 + $0x404] sm:$0xf]
    %v891 = vld [vmem:[#allocation6 + $0x408] sm:$0xf]
    %v892 = vld [vmem:[#allocation6 + $0x40c] sm:$0xf]
    %v893 = vld [vmem:[#allocation6 + $0x410] sm:$0xf]
    %v894 = vld [vmem:[#allocation6 + $0x414] sm:$0xf]
    %v895 = vld [vmem:[#allocation6 + $0x418] sm:$0xf]
    %v896 = vld [vmem:[#allocation6 + $0x41c] sm:$0xf]
    %v897 = vld [vmem:[#allocation6 + $0x420] sm:$0xf]
    %v898 = vld [vmem:[#allocation6 + $0x424] sm:$0xf]
    %v899 = vld [vmem:[#allocation6 + $0x428] sm:$0xf]
    %v900 = vld [vmem:[#allocation6 + $0x42c] sm:$0xf]
    %v901 = vld [vmem:[#allocation6 + $0x430] sm:$0xf]
    %v902 = vld [vmem:[#allocation6 + $0x434] sm:$0xf]
    %v903 = vld [vmem:[#allocation6 + $0x438] sm:$0xf]
    %v904 = vld [vmem:[#allocation6 + $0x43c] sm:$0xf]
    %v905 = vld [vmem:[#allocation6 + $0x440] sm:$0xf]
    %v906 = vld [vmem:[#allocation6 + $0x444] sm:$0xf]
    %v907 = vld [vmem:[#allocation6 + $0x448] sm:$0xf]
    %v908 = vld [vmem:[#allocation6 + $0x44c] sm:$0xf]
    %v909 = vld [vmem:[#allocation6 + $0x450] sm:$0xf]
    %v910 = vld [vmem:[#allocation6 + $0x454] sm:$0xf]
    %v911 = vld [vmem:[#allocation6 + $0x458] sm:$0xf]
    %v912 = vld [vmem:[#allocation6 + $0x45c] sm:$0xf]
    %v913 = vld [vmem:[#allocation6 + $0x460] sm:$0xf]
    %v914 = vld [vmem:[#allocation6 + $0x464] sm:$0xf]
    %v915 = vld [vmem:[#allocation6 + $0x468] sm:$0xf]
    %v916 = vld [vmem:[#allocation6 + $0x46c] sm:$0xf]
    %v917 = vld [vmem:[#allocation6 + $0x470] sm:$0xf]
    %v918 = vld [vmem:[#allocation6 + $0x474] sm:$0xf]
    %v919 = vld [vmem:[#allocation6 + $0x478] sm:$0xf]
    %v920 = vld [vmem:[#allocation6 + $0x47c] sm:$0xf]
    %v921 = vunpack.c.l.bf16 %v633
    %v922 = vunpack.c.l.bf16 %v634
    %v923 = vunpack.c.l.bf16 %v635
    %v924 = vunpack.c.l.bf16 %v636
    %v925 = vunpack.c.l.bf16 %v637
    %v926 = vunpack.c.l.bf16 %v638
    %v927 = vunpack.c.l.bf16 %v639
    %v928 = vunpack.c.l.bf16 %v640
    %v929 = vunpack.c.l.bf16 %v641
    %v930 = vunpack.c.l.bf16 %v642
    %v931 = vunpack.c.l.bf16 %v643
    %v932 = vunpack.c.l.bf16 %v644
    %v933 = vunpack.c.l.bf16 %v645
    %v934 = vunpack.c.l.bf16 %v646
    %v935 = vunpack.c.l.bf16 %v647
    %v936 = vunpack.c.l.bf16 %v648
    %v937 = vunpack.c.l.bf16 %v649
    %v938 = vunpack.c.l.bf16 %v650
    %v939 = vunpack.c.l.bf16 %v651
    %v940 = vunpack.c.l.bf16 %v652
    %v941 = vunpack.c.l.bf16 %v653
    %v942 = vunpack.c.l.bf16 %v654
    %v943 = vunpack.c.l.bf16 %v655
    %v944 = vunpack.c.l.bf16 %v656
    %v945 = vunpack.c.l.bf16 %v657
    %v946 = vunpack.c.l.bf16 %v658
    %v947 = vunpack.c.l.bf16 %v659
    %v948 = vunpack.c.l.bf16 %v660
    %v949 = vunpack.c.l.bf16 %v661
    %v950 = vunpack.c.l.bf16 %v662
    %v951 = vunpack.c.l.bf16 %v663
    %v952 = vunpack.c.l.bf16 %v664
    %v953 = vunpack.c.l.bf16 %v665
    %v954 = vunpack.c.l.bf16 %v666
    %v955 = vunpack.c.l.bf16 %v667
    %v956 = vunpack.c.l.bf16 %v668
    %v957 = vunpack.c.l.bf16 %v669
    %v958 = vunpack.c.l.bf16 %v670
    %v959 = vunpack.c.l.bf16 %v671
    %v960 = vunpack.c.l.bf16 %v672
    %v961 = vunpack.c.l.bf16 %v673
    %v962 = vunpack.c.l.bf16 %v674
    %v963 = vunpack.c.l.bf16 %v675
    %v964 = vunpack.c.l.bf16 %v676
    %v965 = vunpack.c.l.bf16 %v677
    %v966 = vunpack.c.l.bf16 %v678
    %v967 = vunpack.c.l.bf16 %v679
    %v968 = vunpack.c.l.bf16 %v680
    %v969 = vunpack.c.l.bf16 %v681
    %v970 = vunpack.c.l.bf16 %v682
    %v971 = vunpack.c.l.bf16 %v683
    %v972 = vunpack.c.l.bf16 %v684
    %v973 = vunpack.c.l.bf16 %v685
    %v974 = vunpack.c.l.bf16 %v686
    %v975 = vunpack.c.l.bf16 %v687
    %v976 = vunpack.c.l.bf16 %v688
    %v977 = vunpack.c.l.bf16 %v689
    %v978 = vunpack.c.l.bf16 %v690
    %v979 = vunpack.c.l.bf16 %v691
    %v980 = vunpack.c.l.bf16 %v692
    %v981 = vunpack.c.l.bf16 %v693
    %v982 = vunpack.c.l.bf16 %v694
    %v983 = vunpack.c.l.bf16 %v695
    %v984 = vunpack.c.l.bf16 %v696
    %v985 = vunpack.c.l.bf16 %v697
    %v986 = vunpack.c.l.bf16 %v698
    %v987 = vunpack.c.l.bf16 %v699
    %v988 = vunpack.c.l.bf16 %v700
    %v989 = vunpack.c.l.bf16 %v701
    %v990 = vunpack.c.l.bf16 %v702
    %v991 = vunpack.c.l.bf16 %v703
    %v992 = vunpack.c.l.bf16 %v704
    %v993 = vunpack.c.l.bf16 %v705
    %v994 = vunpack.c.l.bf16 %v706
    %v995 = vunpack.c.l.bf16 %v707
    %v996 = vunpack.c.l.bf16 %v708
    %v997 = vunpack.c.l.bf16 %v709
    %v998 = vunpack.c.l.bf16 %v710
    %v999 = vunpack.c.l.bf16 %v711
    %v1000 = vunpack.c.l.bf16 %v712
    %v1001 = vunpack.c.l.bf16 %v713
    %v1002 = vunpack.c.l.bf16 %v714
    %v1003 = vunpack.c.l.bf16 %v715
    %v1004 = vunpack.c.l.bf16 %v716
    %v1005 = vunpack.c.l.bf16 %v717
    %v1006 = vunpack.c.l.bf16 %v718
    %v1007 = vunpack.c.l.bf16 %v719
    %v1008 = vunpack.c.l.bf16 %v720
    %v1009 = vunpack.c.l.bf16 %v721
    %v1010 = vunpack.c.l.bf16 %v722
    %v1011 = vunpack.c.l.bf16 %v723
    %v1012 = vunpack.c.l.bf16 %v724
    %v1013 = vunpack.c.l.bf16 %v725
    %v1014 = vunpack.c.l.bf16 %v726
    %v1015 = vunpack.c.l.bf16 %v727
    %v1016 = vunpack.c.l.bf16 %v728
    %v1017 = vunpack.c.l.bf16 %v729
    %v1018 = vunpack.c.l.bf16 %v730
    %v1019 = vunpack.c.l.bf16 %v731
    %v1020 = vunpack.c.l.bf16 %v732
    %v1021 = vunpack.c.l.bf16 %v733
    %v1022 = vunpack.c.l.bf16 %v734
    %v1023 = vunpack.c.l.bf16 %v735
    %v1024 = vunpack.c.l.bf16 %v736
    %v1025 = vunpack.c.l.bf16 %v737
    %v1026 = vunpack.c.l.bf16 %v738
    %v1027 = vunpack.c.l.bf16 %v739
    %v1028 = vunpack.c.l.bf16 %v740
    %v1029 = vunpack.c.l.bf16 %v741
    %v1030 = vunpack.c.l.bf16 %v742
    %v1031 = vunpack.c.l.bf16 %v743
    %v1032 = vunpack.c.l.bf16 %v744
    %v1033 = vunpack.c.l.bf16 %v745
    %v1034 = vunpack.c.l.bf16 %v746
    %v1035 = vunpack.c.l.bf16 %v747
    %v1036 = vunpack.c.l.bf16 %v748
    %v1037 = vunpack.c.l.bf16 %v749
    %v1038 = vunpack.c.l.bf16 %v750
    %v1039 = vunpack.c.l.bf16 %v751
    %v1040 = vunpack.c.l.bf16 %v752
    %v1041 = vunpack.c.l.bf16 %v753
    %v1042 = vunpack.c.l.bf16 %v754
    %v1043 = vunpack.c.l.bf16 %v755
    %v1044 = vunpack.c.l.bf16 %v756
    %v1045 = vunpack.c.l.bf16 %v757
    %v1046 = vunpack.c.l.bf16 %v758
    %v1047 = vunpack.c.l.bf16 %v759
    %v1048 = vunpack.c.l.bf16 %v760
    %v1049 = vunpack.c.l.bf16 %v761
    %v1050 = vunpack.c.l.bf16 %v762
    %v1051 = vunpack.c.l.bf16 %v763
    %v1052 = vunpack.c.l.bf16 %v764
    %v1053 = vunpack.c.l.bf16 %v765
    %v1054 = vunpack.c.l.bf16 %v766
    %v1055 = vunpack.c.l.bf16 %v767
    %v1056 = vunpack.c.l.bf16 %v768
    %v1057 = vunpack.c.l.bf16 %v769
    %v1058 = vunpack.c.l.bf16 %v770
    %v1059 = vunpack.c.l.bf16 %v771
    %v1060 = vunpack.c.l.bf16 %v772
    %v1061 = vunpack.c.l.bf16 %v773
    %v1062 = vunpack.c.l.bf16 %v774
    %v1063 = vunpack.c.l.bf16 %v775
    %v1064 = vunpack.c.l.bf16 %v776
    %v1065 = vunpack.c.l.bf16 %v777
    %v1066 = vunpack.c.l.bf16 %v778
    %v1067 = vunpack.c.l.bf16 %v779
    %v1068 = vunpack.c.l.bf16 %v780
    %v1069 = vunpack.c.l.bf16 %v781
    %v1070 = vunpack.c.l.bf16 %v782
    %v1071 = vunpack.c.l.bf16 %v783
    %v1072 = vunpack.c.l.bf16 %v784
    %v1073 = vunpack.c.l.bf16 %v785
    %v1074 = vunpack.c.l.bf16 %v786
    %v1075 = vunpack.c.l.bf16 %v787
    %v1076 = vunpack.c.l.bf16 %v788
    %v1077 = vunpack.c.l.bf16 %v789
    %v1078 = vunpack.c.l.bf16 %v790
    %v1079 = vunpack.c.l.bf16 %v791
    %v1080 = vunpack.c.l.bf16 %v792
    %v1081 = vunpack.c.l.bf16 %v793
    %v1082 = vunpack.c.l.bf16 %v794
    %v1083 = vunpack.c.l.bf16 %v795
    %v1084 = vunpack.c.l.bf16 %v796
    %v1085 = vunpack.c.l.bf16 %v797
    %v1086 = vunpack.c.l.bf16 %v798
    %v1087 = vunpack.c.l.bf16 %v799
    %v1088 = vunpack.c.l.bf16 %v800
    %v1089 = vunpack.c.l.bf16 %v801
    %v1090 = vunpack.c.l.bf16 %v802
    %v1091 = vunpack.c.l.bf16 %v803
    %v1092 = vunpack.c.l.bf16 %v804
    %v1093 = vunpack.c.l.bf16 %v805
    %v1094 = vunpack.c.l.bf16 %v806
    %v1095 = vunpack.c.l.bf16 %v807
    %v1096 = vunpack.c.l.bf16 %v808
    %v1097 = vunpack.c.l.bf16 %v809
    %v1098 = vunpack.c.l.bf16 %v810
    %v1099 = vunpack.c.l.bf16 %v811
    %v1100 = vunpack.c.l.bf16 %v812
    %v1101 = vunpack.c.l.bf16 %v813
    %v1102 = vunpack.c.l.bf16 %v814
    %v1103 = vunpack.c.l.bf16 %v815
    %v1104 = vunpack.c.l.bf16 %v816
    %v1105 = vunpack.c.l.bf16 %v817
    %v1106 = vunpack.c.l.bf16 %v818
    %v1107 = vunpack.c.l.bf16 %v819
    %v1108 = vunpack.c.l.bf16 %v820
    %v1109 = vunpack.c.l.bf16 %v821
    %v1110 = vunpack.c.l.bf16 %v822
    %v1111 = vunpack.c.l.bf16 %v823
    %v1112 = vunpack.c.l.bf16 %v824
    %v1113 = vunpack.c.l.bf16 %v825
    %v1114 = vunpack.c.l.bf16 %v826
    %v1115 = vunpack.c.l.bf16 %v827
    %v1116 = vunpack.c.l.bf16 %v828
    %v1117 = vunpack.c.l.bf16 %v829
    %v1118 = vunpack.c.l.bf16 %v830
    %v1119 = vunpack.c.l.bf16 %v831
    %v1120 = vunpack.c.l.bf16 %v832
    %v1121 = vunpack.c.l.bf16 %v833
    %v1122 = vunpack.c.l.bf16 %v834
    %v1123 = vunpack.c.l.bf16 %v835
    %v1124 = vunpack.c.l.bf16 %v836
    %v1125 = vunpack.c.l.bf16 %v837
    %v1126 = vunpack.c.l.bf16 %v838
    %v1127 = vunpack.c.l.bf16 %v839
    %v1128 = vunpack.c.l.bf16 %v840
    %v1129 = vunpack.c.l.bf16 %v841
    %v1130 = vunpack.c.l.bf16 %v842
    %v1131 = vunpack.c.l.bf16 %v843
    %v1132 = vunpack.c.l.bf16 %v844
    %v1133 = vunpack.c.l.bf16 %v845
    %v1134 = vunpack.c.l.bf16 %v846
    %v1135 = vunpack.c.l.bf16 %v847
    %v1136 = vunpack.c.l.bf16 %v848
    %v1137 = vunpack.c.l.bf16 %v849
    %v1138 = vunpack.c.l.bf16 %v850
    %v1139 = vunpack.c.l.bf16 %v851
    %v1140 = vunpack.c.l.bf16 %v852
    %v1141 = vunpack.c.l.bf16 %v853
    %v1142 = vunpack.c.l.bf16 %v854
    %v1143 = vunpack.c.l.bf16 %v855
    %v1144 = vunpack.c.l.bf16 %v856
    %v1145 = vunpack.c.l.bf16 %v857
    %v1146 = vunpack.c.l.bf16 %v858
    %v1147 = vunpack.c.l.bf16 %v859
    %v1148 = vunpack.c.l.bf16 %v860
    %v1149 = vunpack.c.l.bf16 %v861
    %v1150 = vunpack.c.l.bf16 %v862
    %v1151 = vunpack.c.l.bf16 %v863
    %v1152 = vunpack.c.l.bf16 %v864
    %v1153 = vunpack.c.l.bf16 %v865
    %v1154 = vunpack.c.l.bf16 %v866
    %v1155 = vunpack.c.l.bf16 %v867
    %v1156 = vunpack.c.l.bf16 %v868
    %v1157 = vunpack.c.l.bf16 %v869
    %v1158 = vunpack.c.l.bf16 %v870
    %v1159 = vunpack.c.l.bf16 %v871
    %v1160 = vunpack.c.l.bf16 %v872
    %v1161 = vunpack.c.l.bf16 %v873
    %v1162 = vunpack.c.l.bf16 %v874
    %v1163 = vunpack.c.l.bf16 %v875
    %v1164 = vunpack.c.l.bf16 %v876
    %v1165 = vunpack.c.l.bf16 %v877
    %v1166 = vunpack.c.l.bf16 %v878
    %v1167 = vunpack.c.l.bf16 %v879
    %v1168 = vunpack.c.l.bf16 %v880
    %v1169 = vunpack.c.l.bf16 %v881
    %v1170 = vunpack.c.l.bf16 %v882
    %v1171 = vunpack.c.l.bf16 %v883
    %v1172 = vunpack.c.l.bf16 %v884
    %v1173 = vunpack.c.l.bf16 %v885
    %v1174 = vunpack.c.l.bf16 %v886
    %v1175 = vunpack.c.l.bf16 %v887
    %v1176 = vunpack.c.l.bf16 %v888
    %v1177 = vunpack.c.l.bf16 %v889
    %v1178 = vunpack.c.l.bf16 %v890
    %v1179 = vunpack.c.l.bf16 %v891
    %v1180 = vunpack.c.l.bf16 %v892
    %v1181 = vunpack.c.l.bf16 %v893
    %v1182 = vunpack.c.l.bf16 %v894
    %v1183 = vunpack.c.l.bf16 %v895
    %v1184 = vunpack.c.l.bf16 %v896
    %v1185 = vunpack.c.l.bf16 %v897
    %v1186 = vunpack.c.l.bf16 %v898
    %v1187 = vunpack.c.l.bf16 %v899
    %v1188 = vunpack.c.l.bf16 %v900
    %v1189 = vunpack.c.l.bf16 %v901
    %v1190 = vunpack.c.l.bf16 %v902
    %v1191 = vunpack.c.l.bf16 %v903
    %v1192 = vunpack.c.l.bf16 %v904
    %v1193 = vunpack.c.l.bf16 %v905
    %v1194 = vunpack.c.l.bf16 %v906
    %v1195 = vunpack.c.l.bf16 %v907
    %v1196 = vunpack.c.l.bf16 %v908
    %v1197 = vunpack.c.l.bf16 %v909
    %v1198 = vunpack.c.l.bf16 %v910
    %v1199 = vunpack.c.l.bf16 %v911
    %v1200 = vunpack.c.l.bf16 %v912
    %v1201 = vunpack.c.l.bf16 %v913
    %v1202 = vunpack.c.l.bf16 %v914
    %v1203 = vunpack.c.l.bf16 %v915
    %v1204 = vunpack.c.l.bf16 %v916
    %v1205 = vunpack.c.l.bf16 %v917
    %v1206 = vunpack.c.l.bf16 %v918
    %v1207 = vunpack.c.l.bf16 %v919
    %v1208 = vunpack.c.l.bf16 %v920
    %v1209 = vsub.f32 %v345, %v921
    %v1210 = vsub.f32 %v346, %v922
    %v1211 = vsub.f32 %v347, %v923
    %v1212 = vsub.f32 %v348, %v924
    %v1213 = vsub.f32 %v349, %v925
    %v1214 = vsub.f32 %v350, %v926
    %v1215 = vsub.f32 %v351, %v927
    %v1216 = vsub.f32 %v352, %v928
    %v1217 = vsub.f32 %v353, %v929
    %v1218 = vsub.f32 %v354, %v930
    %v1219 = vsub.f32 %v355, %v931
    %v1220 = vsub.f32 %v356, %v932
    %v1221 = vsub.f32 %v357, %v933
    %v1222 = vsub.f32 %v358, %v934
    %v1223 = vsub.f32 %v359, %v935
    %v1224 = vsub.f32 %v360, %v936
    %v1225 = vsub.f32 %v361, %v937
    %v1226 = vsub.f32 %v362, %v938
    %v1227 = vsub.f32 %v363, %v939
    %v1228 = vsub.f32 %v364, %v940
    %v1229 = vsub.f32 %v365, %v941
    %v1230 = vsub.f32 %v366, %v942
    %v1231 = vsub.f32 %v367, %v943
    %v1232 = vsub.f32 %v368, %v944
    %v1233 = vsub.f32 %v369, %v945
    %v1234 = vsub.f32 %v370, %v946
    %v1235 = vsub.f32 %v371, %v947
    %v1236 = vsub.f32 %v372, %v948
    %v1237 = vsub.f32 %v373, %v949
    %v1238 = vsub.f32 %v374, %v950
    %v1239 = vsub.f32 %v375, %v951
    %v1240 = vsub.f32 %v376, %v952
    %v1241 = vsub.f32 %v377, %v953
    %v1242 = vsub.f32 %v378, %v954
    %v1243 = vsub.f32 %v379, %v955
    %v1244 = vsub.f32 %v380, %v956
    %v1245 = vsub.f32 %v381, %v957
    %v1246 = vsub.f32 %v382, %v958
    %v1247 = vsub.f32 %v383, %v959
    %v1248 = vsub.f32 %v384, %v960
    %v1249 = vsub.f32 %v385, %v961
    %v1250 = vsub.f32 %v386, %v962
    %v1251 = vsub.f32 %v387, %v963
    %v1252 = vsub.f32 %v388, %v964
    %v1253 = vsub.f32 %v389, %v965
    %v1254 = vsub.f32 %v390, %v966
    %v1255 = vsub.f32 %v391, %v967
    %v1256 = vsub.f32 %v392, %v968
    %v1257 = vsub.f32 %v393, %v969
    %v1258 = vsub.f32 %v394, %v970
    %v1259 = vsub.f32 %v395, %v971
    %v1260 = vsub.f32 %v396, %v972
    %v1261 = vsub.f32 %v397, %v973
    %v1262 = vsub.f32 %v398, %v974
    %v1263 = vsub.f32 %v399, %v975
    %v1264 = vsub.f32 %v400, %v976
    %v1265 = vsub.f32 %v401, %v977
    %v1266 = vsub.f32 %v402, %v978
    %v1267 = vsub.f32 %v403, %v979
    %v1268 = vsub.f32 %v404, %v980
    %v1269 = vsub.f32 %v405, %v981
    %v1270 = vsub.f32 %v406, %v982
    %v1271 = vsub.f32 %v407, %v983
    %v1272 = vsub.f32 %v408, %v984
    %v1273 = vsub.f32 %v409, %v985
    %v1274 = vsub.f32 %v410, %v986
    %v1275 = vsub.f32 %v411, %v987
    %v1276 = vsub.f32 %v412, %v988
    %v1277 = vsub.f32 %v413, %v989
    %v1278 = vsub.f32 %v414, %v990
    %v1279 = vsub.f32 %v415, %v991
    %v1280 = vsub.f32 %v416, %v992
    %v1281 = vsub.f32 %v417, %v993
    %v1282 = vsub.f32 %v418, %v994
    %v1283 = vsub.f32 %v419, %v995
    %v1284 = vsub.f32 %v420, %v996
    %v1285 = vsub.f32 %v421, %v997
    %v1286 = vsub.f32 %v422, %v998
    %v1287 = vsub.f32 %v423, %v999
    %v1288 = vsub.f32 %v424, %v1000
    %v1289 = vsub.f32 %v425, %v1001
    %v1290 = vsub.f32 %v426, %v1002
    %v1291 = vsub.f32 %v427, %v1003
    %v1292 = vsub.f32 %v428, %v1004
    %v1293 = vsub.f32 %v429, %v1005
    %v1294 = vsub.f32 %v430, %v1006
    %v1295 = vsub.f32 %v431, %v1007
    %v1296 = vsub.f32 %v432, %v1008
    %v1297 = vsub.f32 %v433, %v1009
    %v1298 = vsub.f32 %v434, %v1010
    %v1299 = vsub.f32 %v435, %v1011
    %v1300 = vsub.f32 %v436, %v1012
    %v1301 = vsub.f32 %v437, %v1013
    %v1302 = vsub.f32 %v438, %v1014
    %v1303 = vsub.f32 %v439, %v1015
    %v1304 = vsub.f32 %v440, %v1016
    %v1305 = vsub.f32 %v441, %v1017
    %v1306 = vsub.f32 %v442, %v1018
    %v1307 = vsub.f32 %v443, %v1019
    %v1308 = vsub.f32 %v444, %v1020
    %v1309 = vsub.f32 %v445, %v1021
    %v1310 = vsub.f32 %v446, %v1022
    %v1311 = vsub.f32 %v447, %v1023
    %v1312 = vsub.f32 %v448, %v1024
    %v1313 = vsub.f32 %v449, %v1025
    %v1314 = vsub.f32 %v450, %v1026
    %v1315 = vsub.f32 %v451, %v1027
    %v1316 = vsub.f32 %v452, %v1028
    %v1317 = vsub.f32 %v453, %v1029
    %v1318 = vsub.f32 %v454, %v1030
    %v1319 = vsub.f32 %v455, %v1031
    %v1320 = vsub.f32 %v456, %v1032
    %v1321 = vsub.f32 %v457, %v1033
    %v1322 = vsub.f32 %v458, %v1034
    %v1323 = vsub.f32 %v459, %v1035
    %v1324 = vsub.f32 %v460, %v1036
    %v1325 = vsub.f32 %v461, %v1037
    %v1326 = vsub.f32 %v462, %v1038
    %v1327 = vsub.f32 %v463, %v1039
    %v1328 = vsub.f32 %v464, %v1040
    %v1329 = vsub.f32 %v465, %v1041
    %v1330 = vsub.f32 %v466, %v1042
    %v1331 = vsub.f32 %v467, %v1043
    %v1332 = vsub.f32 %v468, %v1044
    %v1333 = vsub.f32 %v469, %v1045
    %v1334 = vsub.f32 %v470, %v1046
    %v1335 = vsub.f32 %v471, %v1047
    %v1336 = vsub.f32 %v472, %v1048
    %v1337 = vsub.f32 %v473, %v1049
    %v1338 = vsub.f32 %v474, %v1050
    %v1339 = vsub.f32 %v475, %v1051
    %v1340 = vsub.f32 %v476, %v1052
    %v1341 = vsub.f32 %v477, %v1053
    %v1342 = vsub.f32 %v478, %v1054
    %v1343 = vsub.f32 %v479, %v1055
    %v1344 = vsub.f32 %v480, %v1056
    %v1345 = vsub.f32 %v481, %v1057
    %v1346 = vsub.f32 %v482, %v1058
    %v1347 = vsub.f32 %v483, %v1059
    %v1348 = vsub.f32 %v484, %v1060
    %v1349 = vsub.f32 %v485, %v1061
    %v1350 = vsub.f32 %v486, %v1062
    %v1351 = vsub.f32 %v487, %v1063
    %v1352 = vsub.f32 %v488, %v1064
    %v1353 = vsub.f32 %v489, %v1065
    %v1354 = vsub.f32 %v490, %v1066
    %v1355 = vsub.f32 %v491, %v1067
    %v1356 = vsub.f32 %v492, %v1068
    %v1357 = vsub.f32 %v493, %v1069
    %v1358 = vsub.f32 %v494, %v1070
    %v1359 = vsub.f32 %v495, %v1071
    %v1360 = vsub.f32 %v496, %v1072
    %v1361 = vsub.f32 %v497, %v1073
    %v1362 = vsub.f32 %v498, %v1074
    %v1363 = vsub.f32 %v499, %v1075
    %v1364 = vsub.f32 %v500, %v1076
    %v1365 = vsub.f32 %v501, %v1077
    %v1366 = vsub.f32 %v502, %v1078
    %v1367 = vsub.f32 %v503, %v1079
    %v1368 = vsub.f32 %v504, %v1080
    %v1369 = vsub.f32 %v505, %v1081
    %v1370 = vsub.f32 %v506, %v1082
    %v1371 = vsub.f32 %v507, %v1083
    %v1372 = vsub.f32 %v508, %v1084
    %v1373 = vsub.f32 %v509, %v1085
    %v1374 = vsub.f32 %v510, %v1086
    %v1375 = vsub.f32 %v511, %v1087
    %v1376 = vsub.f32 %v512, %v1088
    %v1377 = vsub.f32 %v513, %v1089
    %v1378 = vsub.f32 %v514, %v1090
    %v1379 = vsub.f32 %v515, %v1091
    %v1380 = vsub.f32 %v516, %v1092
    %v1381 = vsub.f32 %v517, %v1093
    %v1382 = vsub.f32 %v518, %v1094
    %v1383 = vsub.f32 %v519, %v1095
    %v1384 = vsub.f32 %v520, %v1096
    %v1385 = vsub.f32 %v521, %v1097
    %v1386 = vsub.f32 %v522, %v1098
    %v1387 = vsub.f32 %v523, %v1099
    %v1388 = vsub.f32 %v524, %v1100
    %v1389 = vsub.f32 %v525, %v1101
    %v1390 = vsub.f32 %v526, %v1102
    %v1391 = vsub.f32 %v527, %v1103
    %v1392 = vsub.f32 %v528, %v1104
    %v1393 = vsub.f32 %v529, %v1105
    %v1394 = vsub.f32 %v530, %v1106
    %v1395 = vsub.f32 %v531, %v1107
    %v1396 = vsub.f32 %v532, %v1108
    %v1397 = vsub.f32 %v533, %v1109
    %v1398 = vsub.f32 %v534, %v1110
    %v1399 = vsub.f32 %v535, %v1111
    %v1400 = vsub.f32 %v536, %v1112
    %v1401 = vsub.f32 %v537, %v1113
    %v1402 = vsub.f32 %v538, %v1114
    %v1403 = vsub.f32 %v539, %v1115
    %v1404 = vsub.f32 %v540, %v1116
    %v1405 = vsub.f32 %v541, %v1117
    %v1406 = vsub.f32 %v542, %v1118
    %v1407 = vsub.f32 %v543, %v1119
    %v1408 = vsub.f32 %v544, %v1120
    %v1409 = vsub.f32 %v545, %v1121
    %v1410 = vsub.f32 %v546, %v1122
    %v1411 = vsub.f32 %v547, %v1123
    %v1412 = vsub.f32 %v548, %v1124
    %v1413 = vsub.f32 %v549, %v1125
    %v1414 = vsub.f32 %v550, %v1126
    %v1415 = vsub.f32 %v551, %v1127
    %v1416 = vsub.f32 %v552, %v1128
    %v1417 = vsub.f32 %v553, %v1129
    %v1418 = vsub.f32 %v554, %v1130
    %v1419 = vsub.f32 %v555, %v1131
    %v1420 = vsub.f32 %v556, %v1132
    %v1421 = vsub.f32 %v557, %v1133
    %v1422 = vsub.f32 %v558, %v1134
    %v1423 = vsub.f32 %v559, %v1135
    %v1424 = vsub.f32 %v560, %v1136
    %v1425 = vsub.f32 %v561, %v1137
    %v1426 = vsub.f32 %v562, %v1138
    %v1427 = vsub.f32 %v563, %v1139
    %v1428 = vsub.f32 %v564, %v1140
    %v1429 = vsub.f32 %v565, %v1141
    %v1430 = vsub.f32 %v566, %v1142
    %v1431 = vsub.f32 %v567, %v1143
    %v1432 = vsub.f32 %v568, %v1144
    %v1433 = vsub.f32 %v569, %v1145
    %v1434 = vsub.f32 %v570, %v1146
    %v1435 = vsub.f32 %v571, %v1147
    %v1436 = vsub.f32 %v572, %v1148
    %v1437 = vsub.f32 %v573, %v1149
    %v1438 = vsub.f32 %v574, %v1150
    %v1439 = vsub.f32 %v575, %v1151
    %v1440 = vsub.f32 %v576, %v1152
    %v1441 = vsub.f32 %v577, %v1153
    %v1442 = vsub.f32 %v578, %v1154
    %v1443 = vsub.f32 %v579, %v1155
    %v1444 = vsub.f32 %v580, %v1156
    %v1445 = vsub.f32 %v581, %v1157
    %v1446 = vsub.f32 %v582, %v1158
    %v1447 = vsub.f32 %v583, %v1159
    %v1448 = vsub.f32 %v584, %v1160
    %v1449 = vsub.f32 %v585, %v1161
    %v1450 = vsub.f32 %v586, %v1162
    %v1451 = vsub.f32 %v587, %v1163
    %v1452 = vsub.f32 %v588, %v1164
    %v1453 = vsub.f32 %v589, %v1165
    %v1454 = vsub.f32 %v590, %v1166
    %v1455 = vsub.f32 %v591, %v1167
    %v1456 = vsub.f32 %v592, %v1168
    %v1457 = vsub.f32 %v593, %v1169
    %v1458 = vsub.f32 %v594, %v1170
    %v1459 = vsub.f32 %v595, %v1171
    %v1460 = vsub.f32 %v596, %v1172
    %v1461 = vsub.f32 %v597, %v1173
    %v1462 = vsub.f32 %v598, %v1174
    %v1463 = vsub.f32 %v599, %v1175
    %v1464 = vsub.f32 %v600, %v1176
    %v1465 = vsub.f32 %v601, %v1177
    %v1466 = vsub.f32 %v602, %v1178
    %v1467 = vsub.f32 %v603, %v1179
    %v1468 = vsub.f32 %v604, %v1180
    %v1469 = vsub.f32 %v605, %v1181
    %v1470 = vsub.f32 %v606, %v1182
    %v1471 = vsub.f32 %v607, %v1183
    %v1472 = vsub.f32 %v608, %v1184
    %v1473 = vsub.f32 %v609, %v1185
    %v1474 = vsub.f32 %v610, %v1186
    %v1475 = vsub.f32 %v611, %v1187
    %v1476 = vsub.f32 %v612, %v1188
    %v1477 = vsub.f32 %v613, %v1189
    %v1478 = vsub.f32 %v614, %v1190
    %v1479 = vsub.f32 %v615, %v1191
    %v1480 = vsub.f32 %v616, %v1192
    %v1481 = vsub.f32 %v617, %v1193
    %v1482 = vsub.f32 %v618, %v1194
    %v1483 = vsub.f32 %v619, %v1195
    %v1484 = vsub.f32 %v620, %v1196
    %v1485 = vsub.f32 %v621, %v1197
    %v1486 = vsub.f32 %v622, %v1198
    %v1487 = vsub.f32 %v623, %v1199
    %v1488 = vsub.f32 %v624, %v1200
    %v1489 = vsub.f32 %v625, %v1201
    %v1490 = vsub.f32 %v626, %v1202
    %v1491 = vsub.f32 %v627, %v1203
    %v1492 = vsub.f32 %v628, %v1204
    %v1493 = vsub.f32 %v629, %v1205
    %v1494 = vsub.f32 %v630, %v1206
    %v1495 = vsub.f32 %v631, %v1207
    %v1496 = vsub.f32 %v632, %v1208
    %v1497 = vmul.f32 %v1209, %v1209
    %v1498 = vmul.f32 %v1210, %v1210
    %v1499 = vmul.f32 %v1211, %v1211
    %v1500 = vmul.f32 %v1212, %v1212
    %v1501 = vmul.f32 %v1213, %v1213
    %v1502 = vmul.f32 %v1214, %v1214
    %v1503 = vmul.f32 %v1215, %v1215
    %v1504 = vmul.f32 %v1216, %v1216
    %v1505 = vmul.f32 %v1217, %v1217
    %v1506 = vmul.f32 %v1218, %v1218
    %v1507 = vmul.f32 %v1219, %v1219
    %v1508 = vmul.f32 %v1220, %v1220
    %v1509 = vmul.f32 %v1221, %v1221
    %v1510 = vmul.f32 %v1222, %v1222
    %v1511 = vmul.f32 %v1223, %v1223
    %v1512 = vmul.f32 %v1224, %v1224
    %v1513 = vmul.f32 %v1225, %v1225
    %v1514 = vmul.f32 %v1226, %v1226
    %v1515 = vmul.f32 %v1227, %v1227
    %v1516 = vmul.f32 %v1228, %v1228
    %v1517 = vmul.f32 %v1229, %v1229
    %v1518 = vmul.f32 %v1230, %v1230
    %v1519 = vmul.f32 %v1231, %v1231
    %v1520 = vmul.f32 %v1232, %v1232
    %v1521 = vmul.f32 %v1233, %v1233
    %v1522 = vmul.f32 %v1234, %v1234
    %v1523 = vmul.f32 %v1235, %v1235
    %v1524 = vmul.f32 %v1236, %v1236
    %v1525 = vmul.f32 %v1237, %v1237
    %v1526 = vmul.f32 %v1238, %v1238
    %v1527 = vmul.f32 %v1239, %v1239
    %v1528 = vmul.f32 %v1240, %v1240
    %v1529 = vmul.f32 %v1241, %v1241
    %v1530 = vmul.f32 %v1242, %v1242
    %v1531 = vmul.f32 %v1243, %v1243
    %v1532 = vmul.f32 %v1244, %v1244
    %v1533 = vmul.f32 %v1245, %v1245
    %v1534 = vmul.f32 %v1246, %v1246
    %v1535 = vmul.f32 %v1247, %v1247
    %v1536 = vmul.f32 %v1248, %v1248
    %v1537 = vmul.f32 %v1249, %v1249
    %v1538 = vmul.f32 %v1250, %v1250
    %v1539 = vmul.f32 %v1251, %v1251
    %v1540 = vmul.f32 %v1252, %v1252
    %v1541 = vmul.f32 %v1253, %v1253
    %v1542 = vmul.f32 %v1254, %v1254
    %v1543 = vmul.f32 %v1255, %v1255
    %v1544 = vmul.f32 %v1256, %v1256
    %v1545 = vmul.f32 %v1257, %v1257
    %v1546 = vmul.f32 %v1258, %v1258
    %v1547 = vmul.f32 %v1259, %v1259
    %v1548 = vmul.f32 %v1260, %v1260
    %v1549 = vmul.f32 %v1261, %v1261
    %v1550 = vmul.f32 %v1262, %v1262
    %v1551 = vmul.f32 %v1263, %v1263
    %v1552 = vmul.f32 %v1264, %v1264
    %v1553 = vmul.f32 %v1265, %v1265
    %v1554 = vmul.f32 %v1266, %v1266
    %v1555 = vmul.f32 %v1267, %v1267
    %v1556 = vmul.f32 %v1268, %v1268
    %v1557 = vmul.f32 %v1269, %v1269
    %v1558 = vmul.f32 %v1270, %v1270
    %v1559 = vmul.f32 %v1271, %v1271
    %v1560 = vmul.f32 %v1272, %v1272
    %v1561 = vmul.f32 %v1273, %v1273
    %v1562 = vmul.f32 %v1274, %v1274
    %v1563 = vmul.f32 %v1275, %v1275
    %v1564 = vmul.f32 %v1276, %v1276
    %v1565 = vmul.f32 %v1277, %v1277
    %v1566 = vmul.f32 %v1278, %v1278
    %v1567 = vmul.f32 %v1279, %v1279
    %v1568 = vmul.f32 %v1280, %v1280
    %v1569 = vmul.f32 %v1281, %v1281
    %v1570 = vmul.f32 %v1282, %v1282
    %v1571 = vmul.f32 %v1283, %v1283
    %v1572 = vmul.f32 %v1284, %v1284
    %v1573 = vmul.f32 %v1285, %v1285
    %v1574 = vmul.f32 %v1286, %v1286
    %v1575 = vmul.f32 %v1287, %v1287
    %v1576 = vmul.f32 %v1288, %v1288
    %v1577 = vmul.f32 %v1289, %v1289
    %v1578 = vmul.f32 %v1290, %v1290
    %v1579 = vmul.f32 %v1291, %v1291
    %v1580 = vmul.f32 %v1292, %v1292
    %v1581 = vmul.f32 %v1293, %v1293
    %v1582 = vmul.f32 %v1294, %v1294
    %v1583 = vmul.f32 %v1295, %v1295
    %v1584 = vmul.f32 %v1296, %v1296
    %v1585 = vmul.f32 %v1297, %v1297
    %v1586 = vmul.f32 %v1298, %v1298
    %v1587 = vmul.f32 %v1299, %v1299
    %v1588 = vmul.f32 %v1300, %v1300
    %v1589 = vmul.f32 %v1301, %v1301
    %v1590 = vmul.f32 %v1302, %v1302
    %v1591 = vmul.f32 %v1303, %v1303
    %v1592 = vmul.f32 %v1304, %v1304
    %v1593 = vmul.f32 %v1305, %v1305
    %v1594 = vmul.f32 %v1306, %v1306
    %v1595 = vmul.f32 %v1307, %v1307
    %v1596 = vmul.f32 %v1308, %v1308
    %v1597 = vmul.f32 %v1309, %v1309
    %v1598 = vmul.f32 %v1310, %v1310
    %v1599 = vmul.f32 %v1311, %v1311
    %v1600 = vmul.f32 %v1312, %v1312
    %v1601 = vmul.f32 %v1313, %v1313
    %v1602 = vmul.f32 %v1314, %v1314
    %v1603 = vmul.f32 %v1315, %v1315
    %v1604 = vmul.f32 %v1316, %v1316
    %v1605 = vmul.f32 %v1317, %v1317
    %v1606 = vmul.f32 %v1318, %v1318
    %v1607 = vmul.f32 %v1319, %v1319
    %v1608 = vmul.f32 %v1320, %v1320
    %v1609 = vmul.f32 %v1321, %v1321
    %v1610 = vmul.f32 %v1322, %v1322
    %v1611 = vmul.f32 %v1323, %v1323
    %v1612 = vmul.f32 %v1324, %v1324
    %v1613 = vmul.f32 %v1325, %v1325
    %v1614 = vmul.f32 %v1326, %v1326
    %v1615 = vmul.f32 %v1327, %v1327
    %v1616 = vmul.f32 %v1328, %v1328
    %v1617 = vmul.f32 %v1329, %v1329
    %v1618 = vmul.f32 %v1330, %v1330
    %v1619 = vmul.f32 %v1331, %v1331
    %v1620 = vmul.f32 %v1332, %v1332
    %v1621 = vmul.f32 %v1333, %v1333
    %v1622 = vmul.f32 %v1334, %v1334
    %v1623 = vmul.f32 %v1335, %v1335
    %v1624 = vmul.f32 %v1336, %v1336
    %v1625 = vmul.f32 %v1337, %v1337
    %v1626 = vmul.f32 %v1338, %v1338
    %v1627 = vmul.f32 %v1339, %v1339
    %v1628 = vmul.f32 %v1340, %v1340
    %v1629 = vmul.f32 %v1341, %v1341
    %v1630 = vmul.f32 %v1342, %v1342
    %v1631 = vmul.f32 %v1343, %v1343
    %v1632 = vmul.f32 %v1344, %v1344
    %v1633 = vmul.f32 %v1345, %v1345
    %v1634 = vmul.f32 %v1346, %v1346
    %v1635 = vmul.f32 %v1347, %v1347
    %v1636 = vmul.f32 %v1348, %v1348
    %v1637 = vmul.f32 %v1349, %v1349
    %v1638 = vmul.f32 %v1350, %v1350
    %v1639 = vmul.f32 %v1351, %v1351
    %v1640 = vmul.f32 %v1352, %v1352
    %v1641 = vmul.f32 %v1353, %v1353
    %v1642 = vmul.f32 %v1354, %v1354
    %v1643 = vmul.f32 %v1355, %v1355
    %v1644 = vmul.f32 %v1356, %v1356
    %v1645 = vmul.f32 %v1357, %v1357
    %v1646 = vmul.f32 %v1358, %v1358
    %v1647 = vmul.f32 %v1359, %v1359
    %v1648 = vmul.f32 %v1360, %v1360
    %v1649 = vmul.f32 %v1361, %v1361
    %v1650 = vmul.f32 %v1362, %v1362
    %v1651 = vmul.f32 %v1363, %v1363
    %v1652 = vmul.f32 %v1364, %v1364
    %v1653 = vmul.f32 %v1365, %v1365
    %v1654 = vmul.f32 %v1366, %v1366
    %v1655 = vmul.f32 %v1367, %v1367
    %v1656 = vmul.f32 %v1368, %v1368
    %v1657 = vmul.f32 %v1369, %v1369
    %v1658 = vmul.f32 %v1370, %v1370
    %v1659 = vmul.f32 %v1371, %v1371
    %v1660 = vmul.f32 %v1372, %v1372
    %v1661 = vmul.f32 %v1373, %v1373
    %v1662 = vmul.f32 %v1374, %v1374
    %v1663 = vmul.f32 %v1375, %v1375
    %v1664 = vmul.f32 %v1376, %v1376
    %v1665 = vmul.f32 %v1377, %v1377
    %v1666 = vmul.f32 %v1378, %v1378
    %v1667 = vmul.f32 %v1379, %v1379
    %v1668 = vmul.f32 %v1380, %v1380
    %v1669 = vmul.f32 %v1381, %v1381
    %v1670 = vmul.f32 %v1382, %v1382
    %v1671 = vmul.f32 %v1383, %v1383
    %v1672 = vmul.f32 %v1384, %v1384
    %v1673 = vmul.f32 %v1385, %v1385
    %v1674 = vmul.f32 %v1386, %v1386
    %v1675 = vmul.f32 %v1387, %v1387
    %v1676 = vmul.f32 %v1388, %v1388
    %v1677 = vmul.f32 %v1389, %v1389
    %v1678 = vmul.f32 %v1390, %v1390
    %v1679 = vmul.f32 %v1391, %v1391
    %v1680 = vmul.f32 %v1392, %v1392
    %v1681 = vmul.f32 %v1393, %v1393
    %v1682 = vmul.f32 %v1394, %v1394
    %v1683 = vmul.f32 %v1395, %v1395
    %v1684 = vmul.f32 %v1396, %v1396
    %v1685 = vmul.f32 %v1397, %v1397
    %v1686 = vmul.f32 %v1398, %v1398
    %v1687 = vmul.f32 %v1399, %v1399
    %v1688 = vmul.f32 %v1400, %v1400
    %v1689 = vmul.f32 %v1401, %v1401
    %v1690 = vmul.f32 %v1402, %v1402
    %v1691 = vmul.f32 %v1403, %v1403
    %v1692 = vmul.f32 %v1404, %v1404
    %v1693 = vmul.f32 %v1405, %v1405
    %v1694 = vmul.f32 %v1406, %v1406
    %v1695 = vmul.f32 %v1407, %v1407
    %v1696 = vmul.f32 %v1408, %v1408
    %v1697 = vmul.f32 %v1409, %v1409
    %v1698 = vmul.f32 %v1410, %v1410
    %v1699 = vmul.f32 %v1411, %v1411
    %v1700 = vmul.f32 %v1412, %v1412
    %v1701 = vmul.f32 %v1413, %v1413
    %v1702 = vmul.f32 %v1414, %v1414
    %v1703 = vmul.f32 %v1415, %v1415
    %v1704 = vmul.f32 %v1416, %v1416
    %v1705 = vmul.f32 %v1417, %v1417
    %v1706 = vmul.f32 %v1418, %v1418
    %v1707 = vmul.f32 %v1419, %v1419
    %v1708 = vmul.f32 %v1420, %v1420
    %v1709 = vmul.f32 %v1421, %v1421
    %v1710 = vmul.f32 %v1422, %v1422
    %v1711 = vmul.f32 %v1423, %v1423
    %v1712 = vmul.f32 %v1424, %v1424
    %v1713 = vmul.f32 %v1425, %v1425
    %v1714 = vmul.f32 %v1426, %v1426
    %v1715 = vmul.f32 %v1427, %v1427
    %v1716 = vmul.f32 %v1428, %v1428
    %v1717 = vmul.f32 %v1429, %v1429
    %v1718 = vmul.f32 %v1430, %v1430
    %v1719 = vmul.f32 %v1431, %v1431
    %v1720 = vmul.f32 %v1432, %v1432
    %v1721 = vmul.f32 %v1433, %v1433
    %v1722 = vmul.f32 %v1434, %v1434
    %v1723 = vmul.f32 %v1435, %v1435
    %v1724 = vmul.f32 %v1436, %v1436
    %v1725 = vmul.f32 %v1437, %v1437
    %v1726 = vmul.f32 %v1438, %v1438
    %v1727 = vmul.f32 %v1439, %v1439
    %v1728 = vmul.f32 %v1440, %v1440
    %v1729 = vmul.f32 %v1441, %v1441
    %v1730 = vmul.f32 %v1442, %v1442
    %v1731 = vmul.f32 %v1443, %v1443
    %v1732 = vmul.f32 %v1444, %v1444
    %v1733 = vmul.f32 %v1445, %v1445
    %v1734 = vmul.f32 %v1446, %v1446
    %v1735 = vmul.f32 %v1447, %v1447
    %v1736 = vmul.f32 %v1448, %v1448
    %v1737 = vmul.f32 %v1449, %v1449
    %v1738 = vmul.f32 %v1450, %v1450
    %v1739 = vmul.f32 %v1451, %v1451
    %v1740 = vmul.f32 %v1452, %v1452
    %v1741 = vmul.f32 %v1453, %v1453
    %v1742 = vmul.f32 %v1454, %v1454
    %v1743 = vmul.f32 %v1455, %v1455
    %v1744 = vmul.f32 %v1456, %v1456
    %v1745 = vmul.f32 %v1457, %v1457
    %v1746 = vmul.f32 %v1458, %v1458
    %v1747 = vmul.f32 %v1459, %v1459
    %v1748 = vmul.f32 %v1460, %v1460
    %v1749 = vmul.f32 %v1461, %v1461
    %v1750 = vmul.f32 %v1462, %v1462
    %v1751 = vmul.f32 %v1463, %v1463
    %v1752 = vmul.f32 %v1464, %v1464
    %v1753 = vmul.f32 %v1465, %v1465
    %v1754 = vmul.f32 %v1466, %v1466
    %v1755 = vmul.f32 %v1467, %v1467
    %v1756 = vmul.f32 %v1468, %v1468
    %v1757 = vmul.f32 %v1469, %v1469
    %v1758 = vmul.f32 %v1470, %v1470
    %v1759 = vmul.f32 %v1471, %v1471
    %v1760 = vmul.f32 %v1472, %v1472
    %v1761 = vmul.f32 %v1473, %v1473
    %v1762 = vmul.f32 %v1474, %v1474
    %v1763 = vmul.f32 %v1475, %v1475
    %v1764 = vmul.f32 %v1476, %v1476
    %v1765 = vmul.f32 %v1477, %v1477
    %v1766 = vmul.f32 %v1478, %v1478
    %v1767 = vmul.f32 %v1479, %v1479
    %v1768 = vmul.f32 %v1480, %v1480
    %v1769 = vmul.f32 %v1481, %v1481
    %v1770 = vmul.f32 %v1482, %v1482
    %v1771 = vmul.f32 %v1483, %v1483
    %v1772 = vmul.f32 %v1484, %v1484
    %v1773 = vmul.f32 %v1485, %v1485
    %v1774 = vmul.f32 %v1486, %v1486
    %v1775 = vmul.f32 %v1487, %v1487
    %v1776 = vmul.f32 %v1488, %v1488
    %v1777 = vmul.f32 %v1489, %v1489
    %v1778 = vmul.f32 %v1490, %v1490
    %v1779 = vmul.f32 %v1491, %v1491
    %v1780 = vmul.f32 %v1492, %v1492
    %v1781 = vmul.f32 %v1493, %v1493
    %v1782 = vmul.f32 %v1494, %v1494
    %v1783 = vmul.f32 %v1495, %v1495
    %v1784 = vmul.f32 %v1496, %v1496
    %v1785 = vld [vmem:[#allocation2] sm:$0xff]
    %v1786 = vadd.f32 %v1497, %v1498
    %v1787 = vadd.f32 %v1786, %v1499
    %v1788 = vadd.f32 %v1787, %v1500
    %v1789 = vadd.f32 %v1788, %v1501
    %v1790 = vadd.f32 %v1789, %v1502
    %v1791 = vadd.f32 %v1790, %v1503
    %v1792 = vadd.f32 %v1791, %v1504
    %v1793 = vadd.f32 %v1792, %v1505
    %v1794 = vadd.f32 %v1793, %v1506
    %v1795 = vadd.f32 %v1794, %v1507
    %v1796 = vadd.f32 %v1795, %v1508
    %v1797 = vadd.f32 %v1796, %v1509
    %v1798 = vadd.f32 %v1797, %v1510
    %v1799 = vadd.f32 %v1798, %v1511
    %v1800 = vadd.f32 %v1799, %v1512
    %v1801 = vadd.f32 %v1800, %v1513
    %v1802 = vadd.f32 %v1801, %v1514
    %v1803 = vadd.f32 %v1802, %v1515
    %v1804 = vadd.f32 %v1803, %v1516
    %v1805 = vadd.f32 %v1804, %v1517
    %v1806 = vadd.f32 %v1805, %v1518
    %v1807 = vadd.f32 %v1806, %v1519
    %v1808 = vadd.f32 %v1807, %v1520
    %v1809 = vadd.f32 %v1808, %v1521
    %v1810 = vadd.f32 %v1809, %v1522
    %v1811 = vadd.f32 %v1810, %v1523
    %v1812 = vadd.f32 %v1811, %v1524
    %v1813 = vadd.f32 %v1812, %v1525
    %v1814 = vadd.f32 %v1813, %v1526
    %v1815 = vadd.f32 %v1814, %v1527
    %v1816 = vadd.f32 %v1815, %v1528
    %v1817 = vadd.f32 %v1816, %v1529
    %v1818 = vadd.f32 %v1817, %v1530
    %v1819 = vadd.f32 %v1818, %v1531
    %v1820 = vadd.f32 %v1819, %v1532
    %v1821 = vadd.f32 %v1820, %v1533
    %v1822 = vadd.f32 %v1821, %v1534
    %v1823 = vadd.f32 %v1822, %v1535
    %v1824 = vadd.f32 %v1823, %v1536
    %v1825 = vadd.f32 %v1824, %v1537
    %v1826 = vadd.f32 %v1825, %v1538
    %v1827 = vadd.f32 %v1826, %v1539
    %v1828 = vadd.f32 %v1827, %v1540
    %v1829 = vadd.f32 %v1828, %v1541
    %v1830 = vadd.f32 %v1829, %v1542
    %v1831 = vadd.f32 %v1830, %v1543
    %v1832 = vadd.f32 %v1831, %v1544
    %v1833 = vadd.f32 %v1832, %v1545
    %v1834 = vadd.f32 %v1833, %v1546
    %v1835 = vadd.f32 %v1834, %v1547
    %v1836 = vadd.f32 %v1835, %v1548
    %v1837 = vadd.f32 %v1836, %v1549
    %v1838 = vadd.f32 %v1837, %v1550
    %v1839 = vadd.f32 %v1838, %v1551
    %v1840 = vadd.f32 %v1839, %v1552
    %v1841 = vadd.f32 %v1840, %v1553
    %v1842 = vadd.f32 %v1841, %v1554
    %v1843 = vadd.f32 %v1842, %v1555
    %v1844 = vadd.f32 %v1843, %v1556
    %v1845 = vadd.f32 %v1844, %v1557
    %v1846 = vadd.f32 %v1845, %v1558
    %v1847 = vadd.f32 %v1846, %v1559
    %v1848 = vadd.f32 %v1847, %v1560
    %v1849 = vadd.f32 %v1848, %v1561
    %v1850 = vadd.f32 %v1849, %v1562
    %v1851 = vadd.f32 %v1850, %v1563
    %v1852 = vadd.f32 %v1851, %v1564
    %v1853 = vadd.f32 %v1852, %v1565
    %v1854 = vadd.f32 %v1853, %v1566
    %v1855 = vadd.f32 %v1854, %v1567
    %v1856 = vadd.f32 %v1855, %v1568
    %v1857 = vadd.f32 %v1856, %v1569
    %v1858 = vadd.f32 %v1857, %v1570
    %v1859 = vadd.f32 %v1858, %v1571
    %v1860 = vadd.f32 %v1859, %v1572
    %v1861 = vadd.f32 %v1860, %v1573
    %v1862 = vadd.f32 %v1861, %v1574
    %v1863 = vadd.f32 %v1862, %v1575
    %v1864 = vadd.f32 %v1863, %v1576
    %v1865 = vadd.f32 %v1864, %v1577
    %v1866 = vadd.f32 %v1865, %v1578
    %v1867 = vadd.f32 %v1866, %v1579
    %v1868 = vadd.f32 %v1867, %v1580
    %v1869 = vadd.f32 %v1868, %v1581
    %v1870 = vadd.f32 %v1869, %v1582
    %v1871 = vadd.f32 %v1870, %v1583
    %v1872 = vadd.f32 %v1871, %v1584
    %v1873 = vadd.f32 %v1872, %v1585
    %v1874 = vadd.f32 %v1873, %v1586
    %v1875 = vadd.f32 %v1874, %v1587
    %v1876 = vadd.f32 %v1875, %v1588
    %v1877 = vadd.f32 %v1876, %v1589
    %v1878 = vadd.f32 %v1877, %v1590
    %v1879 = vadd.f32 %v1878, %v1591
    %v1880 = vadd.f32 %v1879, %v1592
    %v1881 = vadd.f32 %v1880, %v1593
    %v1882 = vadd.f32 %v1881, %v1594
    %v1883 = vadd.f32 %v1882, %v1595
    %v1884 = vadd.f32 %v1883, %v1596
    %v1885 = vadd.f32 %v1884, %v1597
    %v1886 = vadd.f32 %v1885, %v1598
    %v1887 = vadd.f32 %v1886, %v1599
    %v1888 = vadd.f32 %v1887, %v1600
    %v1889 = vadd.f32 %v1888, %v1601
    %v1890 = vadd.f32 %v1889, %v1602
    %v1891 = vadd.f32 %v1890, %v1603
    %v1892 = vadd.f32 %v1891, %v1604
    %v1893 = vadd.f32 %v1892, %v1605
    %v1894 = vadd.f32 %v1893, %v1606
    %v1895 = vadd.f32 %v1894, %v1607
    %v1896 = vadd.f32 %v1895, %v1608
    %v1897 = vadd.f32 %v1896, %v1609
    %v1898 = vadd.f32 %v1897, %v1610
    %v1899 = vadd.f32 %v1898, %v1611
    %v1900 = vadd.f32 %v1899, %v1612
    %v1901 = vadd.f32 %v1900, %v1613
    %v1902 = vadd.f32 %v1901, %v1614
    %v1903 = vadd.f32 %v1902, %v1615
    %v1904 = vadd.f32 %v1903, %v1616
    %v1905 = vadd.f32 %v1904, %v1617
    %v1906 = vadd.f32 %v1905, %v1618
    %v1907 = vadd.f32 %v1906, %v1619
    %v1908 = vadd.f32 %v1907, %v1620
    %v1909 = vadd.f32 %v1908, %v1621
    %v1910 = vadd.f32 %v1909, %v1622
    %v1911 = vadd.f32 %v1910, %v1623
    %v1912 = vadd.f32 %v1911, %v1624
    %v1913 = vadd.f32 %v1912, %v1625
    %v1914 = vadd.f32 %v1913, %v1626
    %v1915 = vadd.f32 %v1914, %v1627
    %v1916 = vadd.f32 %v1915, %v1628
    %v1917 = vadd.f32 %v1916, %v1629
    %v1918 = vadd.f32 %v1917, %v1630
    %v1919 = vadd.f32 %v1918, %v1631
    %v1920 = vadd.f32 %v1919, %v1632
    %v1921 = vadd.f32 %v1920, %v1633
    %v1922 = vadd.f32 %v1921, %v1634
    %v1923 = vadd.f32 %v1922, %v1635
    %v1924 = vadd.f32 %v1923, %v1636
    %v1925 = vadd.f32 %v1924, %v1637
    %v1926 = vadd.f32 %v1925, %v1638
    %v1927 = vadd.f32 %v1926, %v1639
    %v1928 = vadd.f32 %v1927, %v1640
    %v1929 = vadd.f32 %v1928, %v1641
    %v1930 = vadd.f32 %v1929, %v1642
    %v1931 = vadd.f32 %v1930, %v1643
    %v1932 = vadd.f32 %v1931, %v1644
    %v1933 = vadd.f32 %v1932, %v1645
    %v1934 = vadd.f32 %v1933, %v1646
    %v1935 = vadd.f32 %v1934, %v1647
    %v1936 = vadd.f32 %v1935, %v1648
    %v1937 = vadd.f32 %v1936, %v1649
    %v1938 = vadd.f32 %v1937, %v1650
    %v1939 = vadd.f32 %v1938, %v1651
    %v1940 = vadd.f32 %v1939, %v1652
    %v1941 = vadd.f32 %v1940, %v1653
    %v1942 = vadd.f32 %v1941, %v1654
    %v1943 = vadd.f32 %v1942, %v1655
    %v1944 = vadd.f32 %v1943, %v1656
    %v1945 = vadd.f32 %v1944, %v1657
    %v1946 = vadd.f32 %v1945, %v1658
    %v1947 = vadd.f32 %v1946, %v1659
    %v1948 = vadd.f32 %v1947, %v1660
    %v1949 = vadd.f32 %v1948, %v1661
    %v1950 = vadd.f32 %v1949, %v1662
    %v1951 = vadd.f32 %v1950, %v1663
    %v1952 = vadd.f32 %v1951, %v1664
    %v1953 = vadd.f32 %v1952, %v1665
    %v1954 = vadd.f32 %v1953, %v1666
    %v1955 = vadd.f32 %v1954, %v1667
    %v1956 = vadd.f32 %v1955, %v1668
    %v1957 = vadd.f32 %v1956, %v1669
    %v1958 = vadd.f32 %v1957, %v1670
    %v1959 = vadd.f32 %v1958, %v1671
    %v1960 = vadd.f32 %v1959, %v1672
    %v1961 = vadd.f32 %v1960, %v1673
    %v1962 = vadd.f32 %v1961, %v1674
    %v1963 = vadd.f32 %v1962, %v1675
    %v1964 = vadd.f32 %v1963, %v1676
    %v1965 = vadd.f32 %v1964, %v1677
    %v1966 = vadd.f32 %v1965, %v1678
    %v1967 = vadd.f32 %v1966, %v1679
    %v1968 = vadd.f32 %v1967, %v1680
    %v1969 = vadd.f32 %v1968, %v1681
    %v1970 = vadd.f32 %v1969, %v1682
    %v1971 = vadd.f32 %v1970, %v1683
    %v1972 = vadd.f32 %v1971, %v1684
    %v1973 = vadd.f32 %v1972, %v1685
    %v1974 = vadd.f32 %v1973, %v1686
    %v1975 = vadd.f32 %v1974, %v1687
    %v1976 = vadd.f32 %v1975, %v1688
    %v1977 = vadd.f32 %v1976, %v1689
    %v1978 = vadd.f32 %v1977, %v1690
    %v1979 = vadd.f32 %v1978, %v1691
    %v1980 = vadd.f32 %v1979, %v1692
    %v1981 = vadd.f32 %v1980, %v1693
    %v1982 = vadd.f32 %v1981, %v1694
    %v1983 = vadd.f32 %v1982, %v1695
    %v1984 = vadd.f32 %v1983, %v1696
    %v1985 = vadd.f32 %v1984, %v1697
    %v1986 = vadd.f32 %v1985, %v1698
    %v1987 = vadd.f32 %v1986, %v1699
    %v1988 = vadd.f32 %v1987, %v1700
    %v1989 = vadd.f32 %v1988, %v1701
    %v1990 = vadd.f32 %v1989, %v1702
    %v1991 = vadd.f32 %v1990, %v1703
    %v1992 = vadd.f32 %v1991, %v1704
    %v1993 = vadd.f32 %v1992, %v1705
    %v1994 = vadd.f32 %v1993, %v1706
    %v1995 = vadd.f32 %v1994, %v1707
    %v1996 = vadd.f32 %v1995, %v1708
    %v1997 = vadd.f32 %v1996, %v1709
    %v1998 = vadd.f32 %v1997, %v1710
    %v1999 = vadd.f32 %v1998, %v1711
    %v2000 = vadd.f32 %v1999, %v1712
    %v2001 = vadd.f32 %v2000, %v1713
    %v2002 = vadd.f32 %v2001, %v1714
    %v2003 = vadd.f32 %v2002, %v1715
    %v2004 = vadd.f32 %v2003, %v1716
    %v2005 = vadd.f32 %v2004, %v1717
    %v2006 = vadd.f32 %v2005, %v1718
    %v2007 = vadd.f32 %v2006, %v1719
    %v2008 = vadd.f32 %v2007, %v1720
    %v2009 = vadd.f32 %v2008, %v1721
    %v2010 = vadd.f32 %v2009, %v1722
    %v2011 = vadd.f32 %v2010, %v1723
    %v2012 = vadd.f32 %v2011, %v1724
    %v2013 = vadd.f32 %v2012, %v1725
    %v2014 = vadd.f32 %v2013, %v1726
    %v2015 = vadd.f32 %v2014, %v1727
    %v2016 = vadd.f32 %v2015, %v1728
    %v2017 = vadd.f32 %v2016, %v1729
    %v2018 = vadd.f32 %v2017, %v1730
    %v2019 = vadd.f32 %v2018, %v1731
    %v2020 = vadd.f32 %v2019, %v1732
    %v2021 = vadd.f32 %v2020, %v1733
    %v2022 = vadd.f32 %v2021, %v1734
    %v2023 = vadd.f32 %v2022, %v1735
    %v2024 = vadd.f32 %v2023, %v1736
    %v2025 = vadd.f32 %v2024, %v1737
    %v2026 = vadd.f32 %v2025, %v1738
    %v2027 = vadd.f32 %v2026, %v1739
    %v2028 = vadd.f32 %v2027, %v1740
    %v2029 = vadd.f32 %v2028, %v1741
    %v2030 = vadd.f32 %v2029, %v1742
    %v2031 = vadd.f32 %v2030, %v1743
    %v2032 = vadd.f32 %v2031, %v1744
    %v2033 = vadd.f32 %v2032, %v1745
    %v2034 = vadd.f32 %v2033, %v1746
    %v2035 = vadd.f32 %v2034, %v1747
    %v2036 = vadd.f32 %v2035, %v1748
    %v2037 = vadd.f32 %v2036, %v1749
    %v2038 = vadd.f32 %v2037, %v1750
    %v2039 = vadd.f32 %v2038, %v1751
    %v2040 = vadd.f32 %v2039, %v1752
    %v2041 = vadd.f32 %v2040, %v1753
    %v2042 = vadd.f32 %v2041, %v1754
    %v2043 = vadd.f32 %v2042, %v1755
    %v2044 = vadd.f32 %v2043, %v1756
    %v2045 = vadd.f32 %v2044, %v1757
    %v2046 = vadd.f32 %v2045, %v1758
    %v2047 = vadd.f32 %v2046, %v1759
    %v2048 = vadd.f32 %v2047, %v1760
    %v2049 = vadd.f32 %v2048, %v1761
    %v2050 = vadd.f32 %v2049, %v1762
    %v2051 = vadd.f32 %v2050, %v1763
    %v2052 = vadd.f32 %v2051, %v1764
    %v2053 = vadd.f32 %v2052, %v1765
    %v2054 = vadd.f32 %v2053, %v1766
    %v2055 = vadd.f32 %v2054, %v1767
    %v2056 = vadd.f32 %v2055, %v1768
    %v2057 = vadd.f32 %v2056, %v1769
    %v2058 = vadd.f32 %v2057, %v1770
    %v2059 = vadd.f32 %v2058, %v1771
    %v2060 = vadd.f32 %v2059, %v1772
    %v2061 = vadd.f32 %v2060, %v1773
    %v2062 = vadd.f32 %v2061, %v1774
    %v2063 = vadd.f32 %v2062, %v1775
    %v2064 = vadd.f32 %v2063, %v1776
    %v2065 = vadd.f32 %v2064, %v1777
    %v2066 = vadd.f32 %v2065, %v1778
    %v2067 = vadd.f32 %v2066, %v1779
    %v2068 = vadd.f32 %v2067, %v1780
    %v2069 = vadd.f32 %v2068, %v1781
    %v2070 = vadd.f32 %v2069, %v1782
    %v2071 = vadd.f32 %v2070, %v1783
    %v2072 = vadd.f32 %v2071, %v1784
    %v2073 = vadd.f32 %v1785, %v2072
    %2074 = vst [vmem:[#allocation2] sm:$0xff] %v2073
    // Predicated region
    $region22: #{tpu_custom_call.1} parent=1 // pred_check
      %p2075 = pneg %p52
    $region23: #{tpu_custom_call.1} parent=1 // pred_check_branch
      %2077 = sbr.rel (%p2075) target = $region25
    $region24: #{tpu_custom_call.1} parent=1 // pred_region
      %v2078 = vld [vmem:[#allocation2] sm:$0xff]
      %2079 = vst [vmem:[#allocation8] sm:$0xff] %v2078
    $region25: #{tpu_custom_call.1} parent=1 // pred_fallthru
      _
    // Predicated region
    $region26: #{tpu_custom_call.1} parent=1 // pred_check
      _
    $region27: #{tpu_custom_call.1} parent=1 // pred_check_branch
      %2081 = sbr.rel (0) target = $region29
    $region28: #{tpu_custom_call.1} parent=1 // pred_region
      %s2083 = ssub.s32 128, 128
      %2084 = vsyncadd [#allocation5], %s2083
      %s2086 = sshll.u32 [#allocation8], 4
      %s2087 = int_to_ptr.vmem [resolvable:$true] %s2086
      %2089 = dma.vmem_to_hbm [thread:$0]  %s2087, 128, %s2, [#allocation5]
    $region29: #{tpu_custom_call.1} parent=1 // pred_fallthru
      _
    // Predicated region
    $region30: #{tpu_custom_call.1} parent=1 // pred_check
      _
    $region31: #{tpu_custom_call.1} parent=1 // pred_check_branch
      %2091 = sbr.rel (0) target = $region33
    $region32: #{tpu_custom_call.1} parent=1 // pred_region
      %2092 = dma.done [#allocation5], 128
    $region33: #{tpu_custom_call.1} parent=1 // pred_fallthru
      _
    %2093 = vsyncpa [#allocation4], 1
    %2094 = vsyncpa [#allocation7], 1
    %2095 = vsyncpa [#allocation5], 1

</llo_original>
